<compile_context>
chip_gen: v5e
topology: v5e:2x2
jax: 0.10.0
libtpu: 0.0.40
codegen_flags: <defaults>
</compile_context>

<pallas_src>
import functools

import jax
import jax.numpy as jnp
from jax.experimental import pallas as pl
from jax.experimental.pallas import tpu as pltpu


def _vmem_limit_bytes():
    # Generation-aware scoped-VMEM budget: leave headroom for compiler scratch.
    cap = 128 * 1024 * 1024
    try:
        info = pltpu.get_tpu_info()
        cap = int(getattr(info, "vmem_capacity_bytes", cap))
    except Exception:
        pass
    return int(min(max(cap - 16 * 1024 * 1024, 32 * 1024 * 1024),
                   96 * 1024 * 1024))


VMEM_LIMIT = _vmem_limit_bytes()


def _tile(dim, target, align):
    """Largest tile <= target that divides dim and keeps (8,128)-friendly sizes.

    Full-extent fallback if no aligned divisor exists.
    TODO(synk): replace the fallback with pad-to-tile + cdiv grid + masking so
    awkward dims can never blow the VMEM budget.
    """
    if dim <= target:
        return dim
    if dim % align == 0:
        t = (target // align) * align
        while t >= align:
            if dim % t == 0:
                return t
            t -= align
    return dim


# ----------------------------- Pallas kernels ------------------------------

def _rmsnorm_kernel(x_ref, w_ref, o_ref):
    # T5LayerNorm: no mean subtraction, no bias, eps = 1e-6.
    x = x_ref[...].astype(jnp.float32)
    var = jnp.mean(x * x, axis=-1, keepdims=True)
    o_ref[...] = (x * jax.lax.rsqrt(var + 1e-6) * w_ref[...]).astype(o_ref.dtype)


def _norm_matmul_kernel(x_ref, scale_ref, w_ref, o_ref):
    # Fused RMSNorm + GEMM (full-K A block): grid = (M//tm, N//tn).
    x = x_ref[...].astype(jnp.float32)
    var = jnp.mean(x * x, axis=-1, keepdims=True)
    xn = (x * jax.lax.rsqrt(var + 1e-6) * scale_ref[...]).astype(w_ref.dtype)
    o_ref[...] = jnp.dot(xn, w_ref[...],
                         preferred_element_type=jnp.float32).astype(o_ref.dtype)


def _matmul_residual_kernel(a_ref, b_ref, res_ref, o_ref, acc_ref):
    # Tiled GEMM with f32 accumulator and fused residual add at finalize.
    # grid = (M//tm, N//tn, K//tk), K innermost.
    k = pl.program_id(2)

    @pl.when(k == 0)
    def _():
        acc_ref[...] = jnp.zeros_like(acc_ref)

    acc_ref[...] += jnp.dot(a_ref[...], b_ref[...],
                            preferred_element_type=jnp.float32)

    @pl.when(k == pl.num_programs(2) - 1)
    def _():
        o_ref[...] = (acc_ref[...]
                      + res_ref[...].astype(jnp.float32)).astype(o_ref.dtype)


def _ff_fused_kernel(x_ref, scale_ref, wi_ref, wo_ref, o_ref, acc_ref):
    # Fused RMSNorm + T5 DenseReluDense + residual add.
    # grid = (M//tm, F//tff), d_ff innermost (reduction).
    f = pl.program_id(1)

    @pl.when(f == 0)
    def _():
        acc_ref[...] = jnp.zeros_like(acc_ref)

    x = x_ref[...].astype(jnp.float32)                     # raw residual block
    var = jnp.mean(x * x, axis=-1, keepdims=True)
    xn = (x * jax.lax.rsqrt(var + 1e-6) * scale_ref[...]).astype(wi_ref.dtype)

    h = jnp.dot(xn, wi_ref[...], preferred_element_type=jnp.float32)
    h = jnp.maximum(h, 0.0).astype(wo_ref.dtype)
    acc_ref[...] += jnp.dot(h, wo_ref[...], preferred_element_type=jnp.float32)

    @pl.when(f == pl.num_programs(1) - 1)
    def _():
        o_ref[...] = (acc_ref[...] + x).astype(o_ref.dtype)


def _flash_attn_kernel(q_ref, k_ref, v_ref, bias_ref, mask_ref, o_ref,
                       m_sc, l_sc, acc_sc):
    # KV-tiled online-softmax attention; grid = (B, H, S//tk), kv innermost.
    # q_ref:    (1, 1, S,  Dk) bf16
    # k/v_ref:  (1, 1, tk, Dk) bf16
    # bias_ref: (1, 1, S,  tk) bf16 (per-head relative position bias)
    # mask_ref: (1, 1, 1,  tk) bf16 (additive key mask, finite large-negative)
    # o_ref:    (1, 1, S,  Dk) bf16
    # T5 does NOT scale scores by 1/sqrt(d_kv).
    kv = pl.program_id(2)

    @pl.when(kv == 0)
    def _():
        m_sc[...] = jnp.full_like(m_sc, -jnp.inf)
        l_sc[...] = jnp.zeros_like(l_sc)
        acc_sc[...] = jnp.zeros_like(acc_sc)

    q = q_ref[0, 0]                                         # (S, Dk)
    k = k_ref[0, 0]                                         # (tk, Dk)
    s = jax.lax.dot_general(q, k, (((1,), (1,)), ((), ())),
                            preferred_element_type=jnp.float32)   # (S, tk) f32
    s = s + bias_ref[0, 0].astype(jnp.float32) + mask_ref[0, 0].astype(jnp.float32)

    m_prev = m_sc[...]
    m_new = jnp.maximum(m_prev, jnp.max(s, axis=-1, keepdims=True))
    alpha = jnp.exp(m_prev - m_new)
    p = jnp.exp(s - m_new)
    l_sc[...] = alpha * l_sc[...] + jnp.sum(p, axis=-1, keepdims=True)
    acc_sc[...] = alpha * acc_sc[...] + jnp.dot(
        p.astype(v_ref.dtype), v_ref[0, 0], preferred_element_type=jnp.float32)
    m_sc[...] = m_new

    @pl.when(kv == pl.num_programs(2) - 1)
    def _():
        denom = jnp.maximum(l_sc[...], 1e-30)   # all-masked rows stay finite
        o_ref[0, 0] = (acc_sc[...] / denom).astype(o_ref.dtype)


# ------------------------------ op wrappers ---------------------------------

def rmsnorm(x, w, *, out_dtype=jnp.float32, tm=512, use_pallas=True):
    # x: (M, D) f32, w: (1, D) f32.  Used only for the final encoder layernorm.
    M, D = x.shape
    if not use_pallas:
        xf = x.astype(jnp.float32)
        var = jnp.mean(xf * xf, axis=-1, keepdims=True)
        return (xf * jax.lax.rsqrt(var + 1e-6) * w).astype(out_dtype)
    tm = _tile(M, tm, 8)
    return pl.pallas_call(
        _rmsnorm_kernel,
        out_shape=jax.ShapeDtypeStruct((M, D), out_dtype),
        grid=(M // tm,),
        in_specs=[pl.BlockSpec((tm, D), lambda i: (i, 0)),
                  pl.BlockSpec((1, D), lambda i: (0, 0))],
        out_specs=pl.BlockSpec((tm, D), lambda i: (i, 0)),
        compiler_params=pltpu.CompilerParams(
            dimension_semantics=("parallel",)),
    )(x, w)


def norm_matmul(x, scale, w, *, out_dtype=jnp.bfloat16, tm=512, tn=256,
                use_pallas=True):
    # out = rmsnorm(x) @ w  with RMSNorm fused into the GEMM A-operand load.
    M, D = x.shape
    _, N = w.shape
    if not use_pallas:
        xf = x.astype(jnp.float32)
        var = jnp.mean(xf * xf, axis=-1, keepdims=True)
        xn = (xf * jax.lax.rsqrt(var + 1e-6) * scale).astype(jnp.bfloat16)
        return jnp.dot(xn, w, preferred_element_type=jnp.float32).astype(out_dtype)
    tm = _tile(M, tm, 8)
    tn = _tile(N, tn, 128)
    cost = pl.CostEstimate(
        flops=2 * M * N * D, transcendentals=M,
        bytes_accessed=int(M * D * x.dtype.itemsize + D * N * w.dtype.itemsize
                           + D * 4 + M * N * jnp.dtype(out_dtype).itemsize))
    return pl.pallas_call(
        _norm_matmul_kernel,
        out_shape=jax.ShapeDtypeStruct((M, N), out_dtype),
        grid_spec=pltpu.PrefetchScalarGridSpec(
            num_scalar_prefetch=0,
            grid=(M // tm, N // tn),
            in_specs=[pl.BlockSpec((tm, D), lambda i, j: (i, 0)),
                      pl.BlockSpec((1, D), lambda i, j: (0, 0)),
                      pl.BlockSpec((D, tn), lambda i, j: (0, j))],
            out_specs=pl.BlockSpec((tm, tn), lambda i, j: (i, j))),
        compiler_params=pltpu.CompilerParams(
            dimension_semantics=("parallel", "parallel"),
            vmem_limit_bytes=VMEM_LIMIT),
        cost_estimate=cost,
    )(x, scale, w)


def matmul_residual(a, b, res, *, out_dtype=jnp.float32, tm=512, tn=256, tk=512,
                    use_pallas=True):
    # out = a @ b + res   (residual add fused into the GEMM finalize).
    M, K = a.shape
    _, N = b.shape
    if not use_pallas:
        return (jnp.dot(a, b, preferred_element_type=jnp.float32)
                + res.astype(jnp.float32)).astype(out_dtype)
    tm = _tile(M, tm, 8)
    tn = _tile(N, tn, 128)
    tk = _tile(K, tk, 128)
    cost = pl.CostEstimate(
        flops=2 * M * N * K, transcendentals=0,
        bytes_accessed=int(M * K * a.dtype.itemsize + K * N * b.dtype.itemsize
                           + M * N * res.dtype.itemsize
                           + M * N * jnp.dtype(out_dtype).itemsize))
    return pl.pallas_call(
        _matmul_residual_kernel,
        out_shape=jax.ShapeDtypeStruct((M, N), out_dtype),
        grid_spec=pltpu.PrefetchScalarGridSpec(
            num_scalar_prefetch=0,
            grid=(M // tm, N // tn, K // tk),
            in_specs=[pl.BlockSpec((tm, tk), lambda i, j, k: (i, k)),
                      pl.BlockSpec((tk, tn), lambda i, j, k: (k, j)),
                      pl.BlockSpec((tm, tn), lambda i, j, k: (i, j))],
            out_specs=pl.BlockSpec((tm, tn), lambda i, j, k: (i, j)),
            scratch_shapes=[pltpu.VMEM((tm, tn), jnp.float32)]),
        compiler_params=pltpu.CompilerParams(
            dimension_semantics=("parallel", "parallel", "arbitrary"),
            vmem_limit_bytes=VMEM_LIMIT),
        cost_estimate=cost,
    )(a, b, res)


def ff_fused(x, scale, wi, wo, *, out_dtype=jnp.float32, tm=512, tff=512,
             use_pallas=True):
    # out = x + DenseReluDense(rmsnorm(x))  (norm + residual both fused).
    M, D = x.shape
    _, F = wi.shape
    if not use_pallas:
        xf = x.astype(jnp.float32)
        var = jnp.mean(xf * xf, axis=-1, keepdims=True)
        xn = (xf * jax.lax.rsqrt(var + 1e-6) * scale).astype(jnp.bfloat16)
        h = jnp.maximum(jnp.dot(xn, wi, preferred_element_type=jnp.float32), 0.0)
        h = h.astype(wo.dtype)
        y = jnp.dot(h, wo, preferred_element_type=jnp.float32)
        return (y + xf).astype(out_dtype)
    tm = _tile(M, tm, 8)
    tff = _tile(F, tff, 128)
    cost = pl.CostEstimate(
        flops=4 * M * D * F, transcendentals=M,
        bytes_accessed=int(M * D * x.dtype.itemsize + D * F * wi.dtype.itemsize
                           + F * D * wo.dtype.itemsize
                           + M * D * jnp.dtype(out_dtype).itemsize))
    return pl.pallas_call(
        _ff_fused_kernel,
        out_shape=jax.ShapeDtypeStruct((M, D), out_dtype),
        grid_spec=pltpu.PrefetchScalarGridSpec(
            num_scalar_prefetch=0,
            grid=(M // tm, F // tff),
            in_specs=[pl.BlockSpec((tm, D), lambda i, f: (i, 0)),
                      pl.BlockSpec((1, D), lambda i, f: (0, 0)),
                      pl.BlockSpec((D, tff), lambda i, f: (0, f)),
                      pl.BlockSpec((tff, D), lambda i, f: (f, 0))],
            out_specs=pl.BlockSpec((tm, D), lambda i, f: (i, 0)),
            scratch_shapes=[pltpu.VMEM((tm, D), jnp.float32)]),
        compiler_params=pltpu.CompilerParams(
            dimension_semantics=("parallel", "arbitrary"),
            vmem_limit_bytes=VMEM_LIMIT),
        cost_estimate=cost,
    )(x, scale, wi, wo)


def flash_attention(q, k, v, rel_bias, ext_mask, *, tk=512, use_pallas=True):
    # q/k/v:    (B, H, S, Dk) bf16
    # rel_bias: (1, H, S, S)  bf16 (shared across batch)
    # ext_mask: (B, 1, 1, S)  bf16 additive (large negative for masked keys)
    # returns   (B, H, S, Dk) bf16
    B, H, S, Dk = q.shape
    if not use_pallas:
        s = jnp.einsum('bhqd,bhkd->bhqk', q, k,
                       preferred_element_type=jnp.float32)
        s = s + rel_bias.astype(jnp.float32) + ext_mask.astype(jnp.float32)
        p = jax.nn.softmax(s, axis=-1).astype(q.dtype)
        ctx = jnp.einsum('bhqk,bhkd->bhqd', p, v,
                         preferred_element_type=jnp.float32)
        return ctx.astype(jnp.bfloat16)
    tkv = _tile(S, tk, 128)
    cost = pl.CostEstimate(
        flops=4 * B * H * S * S * Dk, transcendentals=B * H * S * S,
        bytes_accessed=int(3 * B * H * S * Dk * q.dtype.itemsize
                           + H * S * S * rel_bias.dtype.itemsize
                           + B * S * ext_mask.dtype.itemsize
                           + B * H * S * Dk * 2))
    return pl.pallas_call(
        _flash_attn_kernel,
        out_shape=jax.ShapeDtypeStruct((B, H, S, Dk), jnp.bfloat16),
        grid_spec=pltpu.PrefetchScalarGridSpec(
            num_scalar_prefetch=0,
            grid=(B, H, S // tkv),
            in_specs=[pl.BlockSpec((1, 1, S, Dk), lambda b, h, kv: (b, h, 0, 0)),
                      pl.BlockSpec((1, 1, tkv, Dk), lambda b, h, kv: (b, h, kv, 0)),
                      pl.BlockSpec((1, 1, tkv, Dk), lambda b, h, kv: (b, h, kv, 0)),
                      pl.BlockSpec((1, 1, S, tkv), lambda b, h, kv: (0, h, 0, kv)),
                      pl.BlockSpec((1, 1, 1, tkv), lambda b, h, kv: (b, 0, 0, kv))],
            out_specs=pl.BlockSpec((1, 1, S, Dk), lambda b, h, kv: (b, h, 0, 0)),
            scratch_shapes=[pltpu.VMEM((S, 1), jnp.float32),
                            pltpu.VMEM((S, 1), jnp.float32),
                            pltpu.VMEM((S, Dk), jnp.float32)]),
        compiler_params=pltpu.CompilerParams(
            dimension_semantics=("parallel", "parallel", "arbitrary"),
            vmem_limit_bytes=VMEM_LIMIT),
        cost_estimate=cost,
    )(q, k, v, rel_bias, ext_mask)


# ------------------------- T5 encoder (glue in JAX) --------------------------

def _relative_position_bucket(relative_position, num_buckets=32, max_distance=128):
    # Bidirectional bucketing (encoder self-attention), matches HF T5.
    relative_buckets = jnp.zeros_like(relative_position)
    num_buckets //= 2
    relative_buckets += (relative_position > 0).astype(jnp.int32) * num_buckets
    relative_position = jnp.abs(relative_position)
    max_exact = num_buckets // 2
    is_small = relative_position < max_exact
    safe_rel = jnp.maximum(relative_position, 1).astype(jnp.float32)
    rel_if_large = max_exact + (
        jnp.log(safe_rel / max_exact)
        / jnp.log(max_distance / max_exact)
        * (num_buckets - max_exact)
    ).astype(jnp.int32)
    rel_if_large = jnp.minimum(rel_if_large, num_buckets - 1)
    relative_buckets += jnp.where(is_small, relative_position, rel_if_large)
    return relative_buckets


def t5_encoder_forward(params, input_ids, attention_mask, cfg, use_pallas=True):
    B, S = input_ids.shape
    D, H, Dk = cfg['d_model'], cfg['num_heads'], cfg['d_kv']
    inner = H * Dk

    # Embedding lookup (plain-JAX gather glue).
    hidden = jnp.take(params['embed'], input_ids, axis=0)          # (B, S, D) f32

    # Relative position bias, computed once and shared across layers (T5).
    ctx_pos = jnp.arange(S, dtype=jnp.int32)[:, None]
    mem_pos = jnp.arange(S, dtype=jnp.int32)[None, :]
    buckets = _relative_position_bucket(mem_pos - ctx_pos,
                                        num_buckets=cfg['num_buckets'],
                                        max_distance=cfg['max_distance'])
    rel_bias = jnp.take(params['rel_attn_bias'], buckets, axis=0)   # (S, S, H)
    rel_bias = jnp.transpose(rel_bias, (2, 0, 1))[None]             # (1, H, S, S)
    rel_bias = rel_bias.astype(jnp.bfloat16)
    # Finite large-negative additive mask (bf16-safe, avoids Inf/NaN softmax).
    ext_mask = ((1.0 - attention_mask.astype(jnp.float32)) * (-1e9))
    ext_mask = ext_mask[:, None, None, :].astype(jnp.bfloat16)      # (B, 1, 1, S)

    h2d = hidden.reshape(B * S, D)                                   # f32 residual
    for lp in params['layers']:
        # --- self-attention block (RMSNorm fused into the QKV GEMM) ---
        qkv = norm_matmul(h2d, lp['ln_attn'], lp['w_qkv'],
                          out_dtype=jnp.bfloat16, use_pallas=use_pallas)
        qkv = qkv.reshape(B, S, 3, H, Dk)
        qkv = jnp.transpose(qkv, (2, 0, 3, 1, 4))                    # (3,B,H,S,Dk)
        ctx = flash_attention(qkv[0], qkv[1], qkv[2], rel_bias, ext_mask,
                              use_pallas=use_pallas)                 # (B,H,S,Dk)
        ctx2d = jnp.transpose(ctx, (0, 2, 1, 3)).reshape(B * S, inner)
        # wo projection with the residual add fused into the GEMM finalize.
        h2d = matmul_residual(ctx2d, lp['wo'], h2d,
                              out_dtype=jnp.float32, use_pallas=use_pallas)

        # --- feed-forward block (RMSNorm + residual fused) ---
        h2d = ff_fused(h2d, lp['ln_ff'], lp['wi'], lp['wo_ff'],
                       out_dtype=jnp.float32, use_pallas=use_pallas)

    out = rmsnorm(h2d, params['final_ln'], out_dtype=jnp.float32,
                  use_pallas=use_pallas)
    # encoder(..., return_dict=False) -> (last_hidden_state,)
    return out.reshape(B, S, D)


# ------------------------------- param init ----------------------------------

def init_params(key, cfg):
    D, H, Dk, dff = cfg['d_model'], cfg['num_heads'], cfg['d_kv'], cfg['d_ff']
    inner = H * Dk
    keys = jax.random.split(key, 2 + cfg['num_layers'])
    params = {
        'embed': jax.random.normal(keys[0], (cfg['vocab'], D), jnp.float32) * 0.02,
        'rel_attn_bias': jax.random.normal(keys[1], (cfg['num_buckets'], H),
                                           jnp.float32) * 0.02,
        'final_ln': jnp.ones((1, D), jnp.float32),
        'layers': [],
    }
    for li in range(cfg['num_layers']):
        lk = jax.random.split(keys[2 + li], 6)
        wq = jax.random.normal(lk[0], (D, inner), jnp.float32) * 0.05
        wk = jax.random.normal(lk[1], (D, inner), jnp.float32) * 0.05
        wv = jax.random.normal(lk[2], (D, inner), jnp.float32) * 0.05
        params['layers'].append({
            'ln_attn': jnp.ones((1, D), jnp.float32),
            'w_qkv': jnp.concatenate([wq, wk, wv], axis=1).astype(jnp.bfloat16),
            'wo': (jax.random.normal(lk[3], (inner, D), jnp.float32) * 0.05
                   ).astype(jnp.bfloat16),
            'ln_ff': jnp.ones((1, D), jnp.float32),
            'wi': (jax.random.normal(lk[4], (D, dff), jnp.float32) * 0.05
                   ).astype(jnp.bfloat16),
            'wo_ff': (jax.random.normal(lk[5], (dff, D), jnp.float32) * 0.05
                      ).astype(jnp.bfloat16),
        })
    return params


# ----------------------------------- main ------------------------------------

if __name__ == "__main__":
    cfg = dict(vocab=128, d_model=32, num_heads=4, d_kv=8, d_ff=64,
               num_layers=2, num_buckets=32, max_distance=128)
    params = init_params(jax.random.PRNGKey(0), cfg)

    B, S = 2, 8
    kid, _ = jax.random.split(jax.random.PRNGKey(1))
    input_ids = jax.random.randint(kid, (B, S), 0, cfg['vocab'], dtype=jnp.int32)
    lengths = jnp.array([S, 5], dtype=jnp.int32)
    attention_mask = (jnp.arange(S)[None, :] < lengths[:, None]).astype(jnp.int32)

    fwd = jax.jit(lambda p, i, m: t5_encoder_forward(p, i, m, cfg, use_pallas=True))
    out = jax.block_until_ready(fwd(params, input_ids, attention_mask))

    # Pure-JAX reference of the same (bf16-matmul) math for a correctness check.
    ref = t5_encoder_forward(params, input_ids, attention_mask, cfg,
                             use_pallas=False)
    assert out.shape == (B, S, cfg['d_model'])
    assert jnp.allclose(out, ref, atol=3e-2, rtol=3e-2), "mismatch vs reference"

    print("KERNEL_OK")
</pallas_src>

<mosaic_0001>
module attributes {stable_mosaic.version = 11 : i64} {
  func.func @_norm_matmul_kernel(%arg0: i32, %arg1: i32, %arg2: memref<16x32xf32, #tpu.memory_space<vmem>>, %arg3: memref<1x32xf32, #tpu.memory_space<vmem>>, %arg4: memref<32x96xbf16, #tpu.memory_space<vmem>>, %arg5: memref<16x96xbf16, #tpu.memory_space<vmem>>) attributes {dimension_semantics = [#tpu.dimension_semantics<parallel>, #tpu.dimension_semantics<parallel>], iteration_bounds = array<i64: 1, 1>, scalar_prefetch = 0 : i64, scratch_operands = 0 : i64, tpu.core_type = #tpu.core_type<tc>, window_params = [{transform_indices = @transform_0, window_bounds = array<i64: 16, 32>}, {pipeline_mode = #tpu.pipeline_mode<synchronous>, transform_indices = @transform_1, window_bounds = array<i64: 1, 32>}, {transform_indices = @transform_2, window_bounds = array<i64: 32, 96>}, {transform_indices = @transform_3, window_bounds = array<i64: 16, 96>}]} {
    %c0 = arith.constant 0 : index
    %c0_0 = arith.constant 0 : index
    %0 = vector.load %arg2[%c0, %c0_0] : memref<16x32xf32, #tpu.memory_space<vmem>>, vector<16x32xf32>
    %1 = arith.mulf %0, %0 : vector<16x32xf32>
    %cst = arith.constant dense<0.000000e+00> : vector<16xf32>
    %2 = vector.multi_reduction <add>, %1, %cst [1] : vector<16x32xf32> to vector<16xf32>
    %3 = vector.shape_cast %2 : vector<16xf32> to vector<16x1xf32>
    %cst_1 = arith.constant 3.200000e+01 : f32
    %4 = vector.broadcast %cst_1 : f32 to vector<16x1xf32>
    %5 = arith.divf %3, %4 : vector<16x1xf32>
    %cst_2 = arith.constant 9.99999997E-7 : f32
    %6 = vector.broadcast %cst_2 : f32 to vector<16x1xf32>
    %7 = arith.addf %5, %6 : vector<16x1xf32>
    %8 = math.rsqrt %7 : vector<16x1xf32>
    %9 = vector.broadcast %8 : vector<16x1xf32> to vector<16x32xf32>
    %10 = arith.mulf %0, %9 : vector<16x32xf32>
    %c0_3 = arith.constant 0 : index
    %c0_4 = arith.constant 0 : index
    %11 = vector.load %arg3[%c0_3, %c0_4] : memref<1x32xf32, #tpu.memory_space<vmem>>, vector<1x32xf32>
    %12 = vector.broadcast %11 : vector<1x32xf32> to vector<16x32xf32>
    %13 = arith.mulf %10, %12 : vector<16x32xf32>
    %14 = arith.truncf %13 : vector<16x32xf32> to vector<16x32xbf16>
    %c0_5 = arith.constant 0 : index
    %c0_6 = arith.constant 0 : index
    %15 = vector.load %arg4[%c0_5, %c0_6] : memref<32x96xbf16, #tpu.memory_space<vmem>>, vector<32x96xbf16>
    %cst_7 = arith.constant dense<0.000000e+00> : vector<16x96xf32>
    %16 = tpu.matmul %14, %15, %cst_7 {dimension_numbers = #tpu.dot_dimension_numbers<[1], [0], [0], [1], [0, 0, 1, 1], [], []>} : vector<16x32xbf16>, vector<32x96xbf16>, vector<16x96xf32> -> vector<16x96xf32>
    %17 = arith.truncf %16 : vector<16x96xf32> to vector<16x96xbf16>
    %c0_8 = arith.constant 0 : index
    %c0_9 = arith.constant 0 : index
    %18 = vector.load %arg5[%c0_8, %c0_9] : memref<16x96xbf16, #tpu.memory_space<vmem>>, vector<16x96xbf16>
    tpu.vector_store %arg5[%c0_8, %c0_9], %17 {strides = array<i32>} : memref<16x96xbf16, #tpu.memory_space<vmem>>, vector<16x96xbf16>,
    return
  }
  func.func @transform_0(%arg0: i32, %arg1: i32) -> (i32, i32) {
    %c0_i32 = arith.constant 0 : i32
    %c0_i32_0 = arith.constant 0 : i32
    return %arg0, %c0_i32 : i32, i32
  }
  func.func @transform_1(%arg0: i32, %arg1: i32) -> (i32, i32) {
    %c0_i32 = arith.constant 0 : i32
    %c0_i32_0 = arith.constant 0 : i32
    %c0_i32_1 = arith.constant 0 : i32
    return %c0_i32, %c0_i32_0 : i32, i32
  }
  func.func @transform_2(%arg0: i32, %arg1: i32) -> (i32, i32) {
    %c0_i32 = arith.constant 0 : i32
    %c0_i32_0 = arith.constant 0 : i32
    return %c0_i32, %arg1 : i32, i32
  }
  func.func @transform_3(%arg0: i32, %arg1: i32) -> (i32, i32) {
    %c0_i32 = arith.constant 0 : i32
    return %arg0, %arg1 : i32, i32
  }
}

module attributes {stable_mosaic.version = 11 : i64} {
  func.func @_flash_attn_kernel(%arg0: i32, %arg1: i32, %arg2: i32, %arg3: memref<1x1x8x8xbf16, #tpu.memory_space<vmem>>, %arg4: memref<1x1x8x8xbf16, #tpu.memory_space<vmem>>, %arg5: memref<1x1x8x8xbf16, #tpu.memory_space<vmem>>, %arg6: memref<1x1x8x8xbf16, #tpu.memory_space<vmem>>, %arg7: memref<1x1x1x8xbf16, #tpu.memory_space<vmem>>, %arg8: memref<1x1x8x8xbf16, #tpu.memory_space<vmem>>, %arg9: memref<8x1xf32, #tpu.memory_space<vmem>>, %arg10: memref<8x1xf32, #tpu.memory_space<vmem>>, %arg11: memref<8x8xf32, #tpu.memory_space<vmem>>) attributes {dimension_semantics = [#tpu.dimension_semantics<parallel>, #tpu.dimension_semantics<parallel>, #tpu.dimension_semantics<arbitrary>], iteration_bounds = array<i64: 2, 4, 1>, scalar_prefetch = 0 : i64, scratch_operands = 3 : i64, tpu.core_type = #tpu.core_type<tc>, window_params = [{transform_indices = @transform_0, window_bounds = array<i64: 1, 1, 8, 8>}, {transform_indices = @transform_1, window_bounds = array<i64: 1, 1, 8, 8>}, {transform_indices = @transform_2, window_bounds = array<i64: 1, 1, 8, 8>}, {transform_indices = @transform_3, window_bounds = array<i64: 1, 1, 8, 8>}, {transform_indices = @transform_4, window_bounds = array<i64: 1, 1, 1, 8>}, {transform_indices = @transform_5, window_bounds = array<i64: 1, 1, 8, 8>}]} {
    %c0_i32 = arith.constant 0 : i32
    %0 = arith.cmpi eq, %arg2, %c0_i32 : i32
    %1 = arith.extui %0 : i1 to i32
    %c0_i32_0 = arith.constant 0 : i32
    %2 = arith.cmpi ne, %1, %c0_i32_0 : i32
    scf.if %2 {
      %cst_37 = arith.constant 0xFF800000 : f32
      %45 = vector.broadcast %cst_37 : f32 to vector<8x1xf32>
      %c0_38 = arith.constant 0 : index
      %c0_39 = arith.constant 0 : index
      %46 = vector.load %arg9[%c0_38, %c0_39] : memref<8x1xf32, #tpu.memory_space<vmem>>, vector<8x1xf32>
      tpu.vector_store %arg9[%c0_38, %c0_39], %45 {strides = array<i32>} : memref<8x1xf32, #tpu.memory_space<vmem>>, vector<8x1xf32>,
      %cst_40 = arith.constant 0.000000e+00 : f32
      %47 = vector.broadcast %cst_40 : f32 to vector<8x1xf32>
      %c0_41 = arith.constant 0 : index
      %c0_42 = arith.constant 0 : index
      %48 = vector.load %arg10[%c0_41, %c0_42] : memref<8x1xf32, #tpu.memory_space<vmem>>, vector<8x1xf32>
      tpu.vector_store %arg10[%c0_41, %c0_42], %47 {strides = array<i32>} : memref<8x1xf32, #tpu.memory_space<vmem>>, vector<8x1xf32>,
      %cst_43 = arith.constant 0.000000e+00 : f32
      %49 = vector.broadcast %cst_43 : f32 to vector<8x8xf32>
      %c0_44 = arith.constant 0 : index
      %c0_45 = arith.constant 0 : index
      %50 = vector.load %arg11[%c0_44, %c0_45] : memref<8x8xf32, #tpu.memory_space<vmem>>, vector<8x8xf32>
      tpu.vector_store %arg11[%c0_44, %c0_45], %49 {strides = array<i32>} : memref<8x8xf32, #tpu.memory_space<vmem>>, vector<8x8xf32>,
    } else {
    }
    %c0 = arith.constant 0 : index
    %c0_1 = arith.constant 0 : index
    %c0_2 = arith.constant 0 : index
    %c0_3 = arith.constant 0 : index
    %3 = vector.load %arg3[%c0, %c0_1, %c0_2, %c0_3] : memref<1x1x8x8xbf16, #tpu.memory_space<vmem>>, vector<1x1x8x8xbf16>
    %4 = vector.shape_cast %3 : vector<1x1x8x8xbf16> to vector<8x8xbf16>
    %c0_4 = arith.constant 0 : index
    %c0_5 = arith.constant 0 : index
    %c0_6 = arith.constant 0 : index
    %c0_7 = arith.constant 0 : index
    %5 = vector.load %arg4[%c0_4, %c0_5, %c0_6, %c0_7] : memref<1x1x8x8xbf16, #tpu.memory_space<vmem>>, vector<1x1x8x8xbf16>
    %6 = vector.shape_cast %5 : vector<1x1x8x8xbf16> to vector<8x8xbf16>
    %cst = arith.constant dense<0.000000e+00> : vector<8x8xf32>
    %7 = tpu.matmul %4, %6, %cst {dimension_numbers = #tpu.dot_dimension_numbers<[1], [1], [0], [0], [0, 0, 1, 0], [], []>} : vector<8x8xbf16>, vector<8x8xbf16>, vector<8x8xf32> -> vector<8x8xf32>
    %c0_8 = arith.constant 0 : index
    %c0_9 = arith.constant 0 : index
    %c0_10 = arith.constant 0 : index
    %c0_11 = arith.constant 0 : index
    %8 = vector.load %arg6[%c0_8, %c0_9, %c0_10, %c0_11] : memref<1x1x8x8xbf16, #tpu.memory_space<vmem>>, vector<1x1x8x8xbf16>
    %9 = vector.shape_cast %8 : vector<1x1x8x8xbf16> to vector<8x8xbf16>
    %10 = arith.extf %9 : vector<8x8xbf16> to vector<8x8xf32>
    %11 = arith.addf %7, %10 : vector<8x8xf32>
    %c0_12 = arith.constant 0 : index
    %c0_13 = arith.constant 0 : index
    %c0_14 = arith.constant 0 : index
    %c0_15 = arith.constant 0 : index
    %12 = vector.load %arg7[%c0_12, %c0_13, %c0_14, %c0_15] : memref<1x1x1x8xbf16, #tpu.memory_space<vmem>>, vector<1x1x1x8xbf16>
    %13 = vector.shape_cast %12 : vector<1x1x1x8xbf16> to vector<1x8xbf16>
    %14 = arith.extf %13 : vector<1x8xbf16> to vector<1x8xf32>
    %15 = vector.broadcast %14 : vector<1x8xf32> to vector<8x8xf32>
    %16 = arith.addf %11, %15 : vector<8x8xf32>
    %c0_16 = arith.constant 0 : index
    %c0_17 = arith.constant 0 : index
    %17 = vector.load %arg9[%c0_16, %c0_17] : memref<8x1xf32, #tpu.memory_space<vmem>>, vector<8x1xf32>
    %cst_18 = arith.constant dense<0xFF800000> : vector<8xf32>
    %18 = vector.multi_reduction <maximumf>, %16, %cst_18 [1] : vector<8x8xf32> to vector<8xf32>
    %19 = vector.shape_cast %18 : vector<8xf32> to vector<8x1xf32>
    %20 = arith.maximumf %17, %19 : vector<8x1xf32>
    %21 = arith.subf %17, %20 : vector<8x1xf32>
    %22 = math.exp %21 : vector<8x1xf32>
    %23 = vector.broadcast %20 : vector<8x1xf32> to vector<8x8xf32>
    %24 = arith.subf %16, %23 : vector<8x8xf32>
    %25 = math.exp %24 : vector<8x8xf32>
    %c0_19 = arith.constant 0 : index
    %c0_20 = arith.constant 0 : index
    %26 = vector.load %arg10[%c0_19, %c0_20] : memref<8x1xf32, #tpu.memory_space<vmem>>, vector<8x1xf32>
    %27 = arith.mulf %22, %26 : vector<8x1xf32>
    %cst_21 = arith.constant dense<0.000000e+00> : vector<8xf32>
    %28 = vector.multi_reduction <add>, %25, %cst_21 [1] : vector<8x8xf32> to vector<8xf32>
    %29 = vector.shape_cast %28 : vector<8xf32> to vector<8x1xf32>
    %30 = arith.addf %27, %29 : vector<8x1xf32>
    %c0_22 = arith.constant 0 : index
    %c0_23 = arith.constant 0 : index
    %31 = vector.load %arg10[%c0_22, %c0_23] : memref<8x1xf32, #tpu.memory_space<vmem>>, vector<8x1xf32>
    tpu.vector_store %arg10[%c0_22, %c0_23], %30 {strides = array<i32>} : memref<8x1xf32, #tpu.memory_space<vmem>>, vector<8x1xf32>,
    %c0_24 = arith.constant 0 : index
    %c0_25 = arith.constant 0 : index
    %32 = vector.load %arg11[%c0_24, %c0_25] : memref<8x8xf32, #tpu.memory_space<vmem>>, vector<8x8xf32>
    %33 = vector.broadcast %22 : vector<8x1xf32> to vector<8x8xf32>
    %34 = arith.mulf %33, %32 : vector<8x8xf32>
    %35 = arith.truncf %25 : vector<8x8xf32> to vector<8x8xbf16>
    %c0_26 = arith.constant 0 : index
    %c0_27 = arith.constant 0 : index
    %c0_28 = arith.constant 0 : index
    %c0_29 = arith.constant 0 : index
    %36 = vector.load %arg5[%c0_26, %c0_27, %c0_28, %c0_29] : memref<1x1x8x8xbf16, #tpu.memory_space<vmem>>, vector<1x1x8x8xbf16>
    %37 = vector.shape_cast %36 : vector<1x1x8x8xbf16> to vector<8x8xbf16>
    %cst_30 = arith.constant dense<0.000000e+00> : vector<8x8xf32>
    %38 = tpu.matmul %35, %37, %cst_30 {dimension_numbers = #tpu.dot_dimension_numbers<[1], [0], [0], [1], [0, 0, 1, 1], [], []>} : vector<8x8xbf16>, vector<8x8xbf16>, vector<8x8xf32> -> vector<8x8xf32>
    %39 = arith.addf %34, %38 : vector<8x8xf32>
    %c0_31 = arith.constant 0 : index
    %c0_32 = arith.constant 0 : index
    %40 = vector.load %arg11[%c0_31, %c0_32] : memref<8x8xf32, #tpu.memory_space<vmem>>, vector<8x8xf32>
    tpu.vector_store %arg11[%c0_31, %c0_32], %39 {strides = array<i32>} : memref<8x8xf32, #tpu.memory_space<vmem>>, vector<8x8xf32>,
    %c0_33 = arith.constant 0 : index
    %c0_34 = arith.constant 0 : index
    %41 = vector.load %arg9[%c0_33, %c0_34] : memref<8x1xf32, #tpu.memory_space<vmem>>, vector<8x1xf32>
    tpu.vector_store %arg9[%c0_33, %c0_34], %20 {strides = array<i32>} : memref<8x1xf32, #tpu.memory_space<vmem>>, vector<8x1xf32>,
    %c0_i32_35 = arith.constant 0 : i32
    %42 = arith.cmpi eq, %arg2, %c0_i32_35 : i32
    %43 = arith.extui %42 : i1 to i32
    %c0_i32_36 = arith.constant 0 : i32
    %44 = arith.cmpi ne, %43, %c0_i32_36 : i32
    scf.if %44 {
      %c0_37 = arith.constant 0 : index
      %c0_38 = arith.constant 0 : index
      %45 = vector.load %arg10[%c0_37, %c0_38] : memref<8x1xf32, #tpu.memory_space<vmem>>, vector<8x1xf32>
      %cst_39 = arith.constant 1.000000e-30 : f32
      %46 = vector.broadcast %cst_39 : f32 to vector<8x1xf32>
      %47 = arith.maximumf %45, %46 : vector<8x1xf32>
      %c0_40 = arith.constant 0 : index
      %c0_41 = arith.constant 0 : index
      %48 = vector.load %arg11[%c0_40, %c0_41] : memref<8x8xf32, #tpu.memory_space<vmem>>, vector<8x8xf32>
      %49 = vector.broadcast %47 : vector<8x1xf32> to vector<8x8xf32>
      %50 = arith.divf %48, %49 : vector<8x8xf32>
      %51 = arith.truncf %50 : vector<8x8xf32> to vector<8x8xbf16>
      %c0_42 = arith.constant 0 : index
      %c0_43 = arith.constant 0 : index
      %c0_44 = arith.constant 0 : index
      %c0_45 = arith.constant 0 : index
      %52 = vector.load %arg8[%c0_42, %c0_43, %c0_44, %c0_45] : memref<1x1x8x8xbf16, #tpu.memory_space<vmem>>, vector<1x1x8x8xbf16>
      %53 = vector.shape_cast %52 : vector<1x1x8x8xbf16> to vector<8x8xbf16>
      %54 = vector.shape_cast %51 : vector<8x8xbf16> to vector<1x1x8x8xbf16>
      tpu.vector_store %arg8[%c0_42, %c0_43, %c0_44, %c0_45], %54 {strides = array<i32>} : memref<1x1x8x8xbf16, #tpu.memory_space<vmem>>, vector<1x1x8x8xbf16>,
    } else {
    }
    return
  }
  func.func @transform_0(%arg0: i32, %arg1: i32, %arg2: i32) -> (i32, i32, i32, i32) {
    %c0_i32 = arith.constant 0 : i32
    %c0_i32_0 = arith.constant 0 : i32
    %c0_i32_1 = arith.constant 0 : i32
    return %arg0, %arg1, %c0_i32, %c0_i32_0 : i32, i32, i32, i32
  }
  func.func @transform_1(%arg0: i32, %arg1: i32, %arg2: i32) -> (i32, i32, i32, i32) {
    %c0_i32 = arith.constant 0 : i32
    %c0_i32_0 = arith.constant 0 : i32
    return %arg0, %arg1, %arg2, %c0_i32 : i32, i32, i32, i32
  }
  func.func @transform_2(%arg0: i32, %arg1: i32, %arg2: i32) -> (i32, i32, i32, i32) {
    %c0_i32 = arith.constant 0 : i32
    %c0_i32_0 = arith.constant 0 : i32
    return %arg0, %arg1, %arg2, %c0_i32 : i32, i32, i32, i32
  }
  func.func @transform_3(%arg0: i32, %arg1: i32, %arg2: i32) -> (i32, i32, i32, i32) {
    %c0_i32 = arith.constant 0 : i32
    %c0_i32_0 = arith.constant 0 : i32
    %c0_i32_1 = arith.constant 0 : i32
    return %c0_i32, %arg1, %c0_i32_0, %arg2 : i32, i32, i32, i32
  }
  func.func @transform_4(%arg0: i32, %arg1: i32, %arg2: i32) -> (i32, i32, i32, i32) {
    %c0_i32 = arith.constant 0 : i32
    %c0_i32_0 = arith.constant 0 : i32
    %c0_i32_1 = arith.constant 0 : i32
    return %arg0, %c0_i32, %c0_i32_0, %arg2 : i32, i32, i32, i32
  }
  func.func @transform_5(%arg0: i32, %arg1: i32, %arg2: i32) -> (i32, i32, i32, i32) {
    %c0_i32 = arith.constant 0 : i32
    %c0_i32_0 = arith.constant 0 : i32
    %c0_i32_1 = arith.constant 0 : i32
    return %arg0, %arg1, %c0_i32, %c0_i32_0 : i32, i32, i32, i32
  }
}

module attributes {stable_mosaic.version = 11 : i64} {
  func.func @_matmul_residual_kernel(%arg0: i32, %arg1: i32, %arg2: i32, %arg3: memref<16x32xbf16, #tpu.memory_space<vmem>>, %arg4: memref<32x32xbf16, #tpu.memory_space<vmem>>, %arg5: memref<16x32xf32, #tpu.memory_space<vmem>>, %arg6: memref<16x32xf32, #tpu.memory_space<vmem>>, %arg7: memref<16x32xf32, #tpu.memory_space<vmem>>) attributes {dimension_semantics = [#tpu.dimension_semantics<parallel>, #tpu.dimension_semantics<parallel>, #tpu.dimension_semantics<arbitrary>], iteration_bounds = array<i64: 1, 1, 1>, scalar_prefetch = 0 : i64, scratch_operands = 1 : i64, tpu.core_type = #tpu.core_type<tc>, window_params = [{transform_indices = @transform_0, window_bounds = array<i64: 16, 32>}, {transform_indices = @transform_1, window_bounds = array<i64: 32, 32>}, {transform_indices = @transform_2, window_bounds = array<i64: 16, 32>}, {transform_indices = @transform_3, window_bounds = array<i64: 16, 32>}]} {
    %c0_i32 = arith.constant 0 : i32
    %0 = arith.cmpi eq, %arg2, %c0_i32 : i32
    %1 = arith.extui %0 : i1 to i32
    %c0_i32_0 = arith.constant 0 : i32
    %2 = arith.cmpi ne, %1, %c0_i32_0 : i32
    scf.if %2 {
      %cst_10 = arith.constant 0.000000e+00 : f32
      %12 = vector.broadcast %cst_10 : f32 to vector<16x32xf32>
      %c0_11 = arith.constant 0 : index
      %c0_12 = arith.constant 0 : index
      %13 = vector.load %arg7[%c0_11, %c0_12] : memref<16x32xf32, #tpu.memory_space<vmem>>, vector<16x32xf32>
      tpu.vector_store %arg7[%c0_11, %c0_12], %12 {strides = array<i32>} : memref<16x32xf32, #tpu.memory_space<vmem>>, vector<16x32xf32>,
    } else {
    }
    %c0 = arith.constant 0 : index
    %c0_1 = arith.constant 0 : index
    %3 = vector.load %arg7[%c0, %c0_1] : memref<16x32xf32, #tpu.memory_space<vmem>>, vector<16x32xf32>
    %c0_2 = arith.constant 0 : index
    %c0_3 = arith.constant 0 : index
    %4 = vector.load %arg3[%c0_2, %c0_3] : memref<16x32xbf16, #tpu.memory_space<vmem>>, vector<16x32xbf16>
    %c0_4 = arith.constant 0 : index
    %c0_5 = arith.constant 0 : index
    %5 = vector.load %arg4[%c0_4, %c0_5] : memref<32x32xbf16, #tpu.memory_space<vmem>>, vector<32x32xbf16>
    %cst = arith.constant dense<0.000000e+00> : vector<16x32xf32>
    %6 = tpu.matmul %4, %5, %cst {dimension_numbers = #tpu.dot_dimension_numbers<[1], [0], [0], [1], [0, 0, 1, 1], [], []>} : vector<16x32xbf16>, vector<32x32xbf16>, vector<16x32xf32> -> vector<16x32xf32>
    %7 = arith.addf %3, %6 : vector<16x32xf32>
    %c0_6 = arith.constant 0 : index
    %c0_7 = arith.constant 0 : index
    %8 = vector.load %arg7[%c0_6, %c0_7] : memref<16x32xf32, #tpu.memory_space<vmem>>, vector<16x32xf32>
    tpu.vector_store %arg7[%c0_6, %c0_7], %7 {strides = array<i32>} : memref<16x32xf32, #tpu.memory_space<vmem>>, vector<16x32xf32>,
    %c0_i32_8 = arith.constant 0 : i32
    %9 = arith.cmpi eq, %arg2, %c0_i32_8 : i32
    %10 = arith.extui %9 : i1 to i32
    %c0_i32_9 = arith.constant 0 : i32
    %11 = arith.cmpi ne, %10, %c0_i32_9 : i32
    scf.if %11 {
      %c0_10 = arith.constant 0 : index
      %c0_11 = arith.constant 0 : index
      %12 = vector.load %arg7[%c0_10, %c0_11] : memref<16x32xf32, #tpu.memory_space<vmem>>, vector<16x32xf32>
      %c0_12 = arith.constant 0 : index
      %c0_13 = arith.constant 0 : index
      %13 = vector.load %arg5[%c0_12, %c0_13] : memref<16x32xf32, #tpu.memory_space<vmem>>, vector<16x32xf32>
      %14 = arith.addf %12, %13 : vector<16x32xf32>
      %c0_14 = arith.constant 0 : index
      %c0_15 = arith.constant 0 : index
      %15 = vector.load %arg6[%c0_14, %c0_15] : memref<16x32xf32, #tpu.memory_space<vmem>>, vector<16x32xf32>
      tpu.vector_store %arg6[%c0_14, %c0_15], %14 {strides = array<i32>} : memref<16x32xf32, #tpu.memory_space<vmem>>, vector<16x32xf32>,
    } else {
    }
    return
  }
  func.func @transform_0(%arg0: i32, %arg1: i32, %arg2: i32) -> (i32, i32) {
    %c0_i32 = arith.constant 0 : i32
    return %arg0, %arg2 : i32, i32
  }
  func.func @transform_1(%arg0: i32, %arg1: i32, %arg2: i32) -> (i32, i32) {
    %c0_i32 = arith.constant 0 : i32
    return %arg2, %arg1 : i32, i32
  }
  func.func @transform_2(%arg0: i32, %arg1: i32, %arg2: i32) -> (i32, i32) {
    %c0_i32 = arith.constant 0 : i32
    return %arg0, %arg1 : i32, i32
  }
  func.func @transform_3(%arg0: i32, %arg1: i32, %arg2: i32) -> (i32, i32) {
    %c0_i32 = arith.constant 0 : i32
    return %arg0, %arg1 : i32, i32
  }
}

module attributes {stable_mosaic.version = 11 : i64} {
  func.func @_rmsnorm_kernel(%arg0: i32, %arg1: memref<16x32xf32, #tpu.memory_space<vmem>>, %arg2: memref<1x32xf32, #tpu.memory_space<vmem>>, %arg3: memref<16x32xf32, #tpu.memory_space<vmem>>) attributes {dimension_semantics = [#tpu.dimension_semantics<parallel>], iteration_bounds = array<i64: 1>, scalar_prefetch = 0 : i64, scratch_operands = 0 : i64, tpu.core_type = #tpu.core_type<tc>, window_params = [{transform_indices = @transform_0, window_bounds = array<i64: 16, 32>}, {pipeline_mode = #tpu.pipeline_mode<synchronous>, transform_indices = @transform_1, window_bounds = array<i64: 1, 32>}, {transform_indices = @transform_2, window_bounds = array<i64: 16, 32>}]} {
    %c0 = arith.constant 0 : index
    %c0_0 = arith.constant 0 : index
    %0 = vector.load %arg1[%c0, %c0_0] : memref<16x32xf32, #tpu.memory_space<vmem>>, vector<16x32xf32>
    %1 = arith.mulf %0, %0 : vector<16x32xf32>
    %cst = arith.constant dense<0.000000e+00> : vector<16xf32>
    %2 = vector.multi_reduction <add>, %1, %cst [1] : vector<16x32xf32> to vector<16xf32>
    %3 = vector.shape_cast %2 : vector<16xf32> to vector<16x1xf32>
    %cst_1 = arith.constant 3.200000e+01 : f32
    %4 = vector.broadcast %cst_1 : f32 to vector<16x1xf32>
    %5 = arith.divf %3, %4 : vector<16x1xf32>
    %cst_2 = arith.constant 9.99999997E-7 : f32
    %6 = vector.broadcast %cst_2 : f32 to vector<16x1xf32>
    %7 = arith.addf %5, %6 : vector<16x1xf32>
    %8 = math.rsqrt %7 : vector<16x1xf32>
    %9 = vector.broadcast %8 : vector<16x1xf32> to vector<16x32xf32>
    %10 = arith.mulf %0, %9 : vector<16x32xf32>
    %c0_3 = arith.constant 0 : index
    %c0_4 = arith.constant 0 : index
    %11 = vector.load %arg2[%c0_3, %c0_4] : memref<1x32xf32, #tpu.memory_space<vmem>>, vector<1x32xf32>
    %12 = vector.broadcast %11 : vector<1x32xf32> to vector<16x32xf32>
    %13 = arith.mulf %10, %12 : vector<16x32xf32>
    %c0_5 = arith.constant 0 : index
    %c0_6 = arith.constant 0 : index
    %14 = vector.load %arg3[%c0_5, %c0_6] : memref<16x32xf32, #tpu.memory_space<vmem>>, vector<16x32xf32>
    tpu.vector_store %arg3[%c0_5, %c0_6], %13 {strides = array<i32>} : memref<16x32xf32, #tpu.memory_space<vmem>>, vector<16x32xf32>,
    return
  }
  func.func @transform_0(%arg0: i32) -> (i32, i32) {
    %c0_i32 = arith.constant 0 : i32
    %c0_i32_0 = arith.constant 0 : i32
    return %arg0, %c0_i32 : i32, i32
  }
  func.func @transform_1(%arg0: i32) -> (i32, i32) {
    %c0_i32 = arith.constant 0 : i32
    %c0_i32_0 = arith.constant 0 : i32
    %c0_i32_1 = arith.constant 0 : i32
    return %c0_i32, %c0_i32_0 : i32, i32
  }
  func.func @transform_2(%arg0: i32) -> (i32, i32) {
    %c0_i32 = arith.constant 0 : i32
    %c0_i32_0 = arith.constant 0 : i32
    return %arg0, %c0_i32 : i32, i32
  }
}

module attributes {stable_mosaic.version = 11 : i64} {
  func.func @_ff_fused_kernel(%arg0: i32, %arg1: i32, %arg2: memref<16x32xf32, #tpu.memory_space<vmem>>, %arg3: memref<1x32xf32, #tpu.memory_space<vmem>>, %arg4: memref<32x64xbf16, #tpu.memory_space<vmem>>, %arg5: memref<64x32xbf16, #tpu.memory_space<vmem>>, %arg6: memref<16x32xf32, #tpu.memory_space<vmem>>, %arg7: memref<16x32xf32, #tpu.memory_space<vmem>>) attributes {dimension_semantics = [#tpu.dimension_semantics<parallel>, #tpu.dimension_semantics<arbitrary>], iteration_bounds = array<i64: 1, 1>, scalar_prefetch = 0 : i64, scratch_operands = 1 : i64, tpu.core_type = #tpu.core_type<tc>, window_params = [{transform_indices = @transform_0, window_bounds = array<i64: 16, 32>}, {pipeline_mode = #tpu.pipeline_mode<synchronous>, transform_indices = @transform_1, window_bounds = array<i64: 1, 32>}, {transform_indices = @transform_2, window_bounds = array<i64: 32, 64>}, {transform_indices = @transform_3, window_bounds = array<i64: 64, 32>}, {transform_indices = @transform_4, window_bounds = array<i64: 16, 32>}]} {
    %c0_i32 = arith.constant 0 : i32
    %0 = arith.cmpi eq, %arg1, %c0_i32 : i32
    %1 = arith.extui %0 : i1 to i32
    %c0_i32_0 = arith.constant 0 : i32
    %2 = arith.cmpi ne, %1, %c0_i32_0 : i32
    scf.if %2 {
      %cst_19 = arith.constant 0.000000e+00 : f32
      %31 = vector.broadcast %cst_19 : f32 to vector<16x32xf32>
      %c0_20 = arith.constant 0 : index
      %c0_21 = arith.constant 0 : index
      %32 = vector.load %arg7[%c0_20, %c0_21] : memref<16x32xf32, #tpu.memory_space<vmem>>, vector<16x32xf32>
      tpu.vector_store %arg7[%c0_20, %c0_21], %31 {strides = array<i32>} : memref<16x32xf32, #tpu.memory_space<vmem>>, vector<16x32xf32>,
    } else {
    }
    %c0 = arith.constant 0 : index
    %c0_1 = arith.constant 0 : index
    %3 = vector.load %arg2[%c0, %c0_1] : memref<16x32xf32, #tpu.memory_space<vmem>>, vector<16x32xf32>
    %4 = arith.mulf %3, %3 : vector<16x32xf32>
    %cst = arith.constant dense<0.000000e+00> : vector<16xf32>
    %5 = vector.multi_reduction <add>, %4, %cst [1] : vector<16x32xf32> to vector<16xf32>
    %6 = vector.shape_cast %5 : vector<16xf32> to vector<16x1xf32>
    %cst_2 = arith.constant 3.200000e+01 : f32
    %7 = vector.broadcast %cst_2 : f32 to vector<16x1xf32>
    %8 = arith.divf %6, %7 : vector<16x1xf32>
    %cst_3 = arith.constant 9.99999997E-7 : f32
    %9 = vector.broadcast %cst_3 : f32 to vector<16x1xf32>
    %10 = arith.addf %8, %9 : vector<16x1xf32>
    %11 = math.rsqrt %10 : vector<16x1xf32>
    %12 = vector.broadcast %11 : vector<16x1xf32> to vector<16x32xf32>
    %13 = arith.mulf %3, %12 : vector<16x32xf32>
    %c0_4 = arith.constant 0 : index
    %c0_5 = arith.constant 0 : index
    %14 = vector.load %arg3[%c0_4, %c0_5] : memref<1x32xf32, #tpu.memory_space<vmem>>, vector<1x32xf32>
    %15 = vector.broadcast %14 : vector<1x32xf32> to vector<16x32xf32>
    %16 = arith.mulf %13, %15 : vector<16x32xf32>
    %17 = arith.truncf %16 : vector<16x32xf32> to vector<16x32xbf16>
    %c0_6 = arith.constant 0 : index
    %c0_7 = arith.constant 0 : index
    %18 = vector.load %arg4[%c0_6, %c0_7] : memref<32x64xbf16, #tpu.memory_space<vmem>>, vector<32x64xbf16>
    %cst_8 = arith.constant dense<0.000000e+00> : vector<16x64xf32>
    %19 = tpu.matmul %17, %18, %cst_8 {dimension_numbers = #tpu.dot_dimension_numbers<[1], [0], [0], [1], [0, 0, 1, 1], [], []>} : vector<16x32xbf16>, vector<32x64xbf16>, vector<16x64xf32> -> vector<16x64xf32>
    %cst_9 = arith.constant 0.000000e+00 : f32
    %20 = vector.broadcast %cst_9 : f32 to vector<16x64xf32>
    %21 = arith.maximumf %19, %20 : vector<16x64xf32>
    %22 = arith.truncf %21 : vector<16x64xf32> to vector<16x64xbf16>
    %c0_10 = arith.constant 0 : index
    %c0_11 = arith.constant 0 : index
    %23 = vector.load %arg7[%c0_10, %c0_11] : memref<16x32xf32, #tpu.memory_space<vmem>>, vector<16x32xf32>
    %c0_12 = arith.constant 0 : index
    %c0_13 = arith.constant 0 : index
    %24 = vector.load %arg5[%c0_12, %c0_13] : memref<64x32xbf16, #tpu.memory_space<vmem>>, vector<64x32xbf16>
    %cst_14 = arith.constant dense<0.000000e+00> : vector<16x32xf32>
    %25 = tpu.matmul %22, %24, %cst_14 {dimension_numbers = #tpu.dot_dimension_numbers<[1], [0], [0], [1], [0, 0, 1, 1], [], []>} : vector<16x64xbf16>, vector<64x32xbf16>, vector<16x32xf32> -> vector<16x32xf32>
    %26 = arith.addf %23, %25 : vector<16x32xf32>
    %c0_15 = arith.constant 0 : index
    %c0_16 = arith.constant 0 : index
    %27 = vector.load %arg7[%c0_15, %c0_16] : memref<16x32xf32, #tpu.memory_space<vmem>>, vector<16x32xf32>
    tpu.vector_store %arg7[%c0_15, %c0_16], %26 {strides = array<i32>} : memref<16x32xf32, #tpu.memory_space<vmem>>, vector<16x32xf32>,
    %c0_i32_17 = arith.constant 0 : i32
    %28 = arith.cmpi eq, %arg1, %c0_i32_17 : i32
    %29 = arith.extui %28 : i1 to i32
    %c0_i32_18 = arith.constant 0 : i32
    %30 = arith.cmpi ne, %29, %c0_i32_18 : i32
    scf.if %30 {
      %c0_19 = arith.constant 0 : index
      %c0_20 = arith.constant 0 : index
      %31 = vector.load %arg7[%c0_19, %c0_20] : memref<16x32xf32, #tpu.memory_space<vmem>>, vector<16x32xf32>
      %32 = arith.addf %31, %3 : vector<16x32xf32>
      %c0_21 = arith.constant 0 : index
      %c0_22 = arith.constant 0 : index
      %33 = vector.load %arg6[%c0_21, %c0_22] : memref<16x32xf32, #tpu.memory_space<vmem>>, vector<16x32xf32>
      tpu.vector_store %arg6[%c0_21, %c0_22], %32 {strides = array<i32>} : memref<16x32xf32, #tpu.memory_space<vmem>>, vector<16x32xf32>,
    } else {
    }
    return
  }
  func.func @transform_0(%arg0: i32, %arg1: i32) -> (i32, i32) {
    %c0_i32 = arith.constant 0 : i32
    %c0_i32_0 = arith.constant 0 : i32
    return %arg0, %c0_i32 : i32, i32
  }
  func.func @transform_1(%arg0: i32, %arg1: i32) -> (i32, i32) {
    %c0_i32 = arith.constant 0 : i32
    %c0_i32_0 = arith.constant 0 : i32
    %c0_i32_1 = arith.constant 0 : i32
    return %c0_i32, %c0_i32_0 : i32, i32
  }
  func.func @transform_2(%arg0: i32, %arg1: i32) -> (i32, i32) {
    %c0_i32 = arith.constant 0 : i32
    %c0_i32_0 = arith.constant 0 : i32
    return %c0_i32, %arg1 : i32, i32
  }
  func.func @transform_3(%arg0: i32, %arg1: i32) -> (i32, i32) {
    %c0_i32 = arith.constant 0 : i32
    %c0_i32_0 = arith.constant 0 : i32
    return %arg1, %c0_i32 : i32, i32
  }
  func.func @transform_4(%arg0: i32, %arg1: i32) -> (i32, i32) {
    %c0_i32 = arith.constant 0 : i32
    %c0_i32_0 = arith.constant 0 : i32
    return %arg0, %c0_i32 : i32, i32
  }
}

</mosaic_0001>

<llo_original>
// kernel: _lambda_.9
$region0: #{_lambda_.9}
  #allocation0 [shape = 'u32[]', space=smem, size = 0x4, offset = 0x4, fixed_abs, tag = 'smem constant byte address 0x4 - core index']
  #allocation1 [shape = 'u32[72,128]{1,0:T(1,128)}', space=vmem, size = 0x9000, scoped, tag = 'internal scratch']
  %s0 = inlined_call_operand.vmem [shape: f32[16,32], index: 0, kind: input, shape index: {}]
  %s1 = inlined_call_operand.vmem [shape: f32[1,32], index: 1, kind: input, shape index: {}]
  %s2 = inlined_call_operand.vmem [shape: bf16[32,96], index: 2, kind: input, shape index: {}]
  %s3 = inlined_call_operand.vmem [shape: bf16[16,96], index: 3, kind: output, shape index: {}]
  %s4 = sld [smem:[#allocation0]]
  $region22: #{_lambda_.9} parent=0
    _
  %s6 = ssub.s32 1, %s4
  %s7 = scalar_select 0, %s6, %s4
  // Predicated region
  $region2: #{_lambda_.9} parent=0 // pred_check
    _
  $region3: #{_lambda_.9} parent=0 // pred_check_branch
    %9 = sbr.rel (0) target = $region5
  $region4: #{_lambda_.9} parent=0 // pred_region
    _
  $region5: #{_lambda_.9} parent=0 // pred_fallthru
    _
  // Predicated region
  $region6: #{_lambda_.9} parent=0 // pred_check
    _
  $region7: #{_lambda_.9} parent=0 // pred_check_branch
    %11 = sbr.rel (0) target = $region9
  $region8: #{_lambda_.9} parent=0 // pred_region
    _
  $region9: #{_lambda_.9} parent=0 // pred_fallthru
    _
  // Predicated region
  $region10: #{_lambda_.9} parent=0 // pred_check
    _
  $region11: #{_lambda_.9} parent=0 // pred_check_branch
    %13 = sbr.rel (0) target = $region13
  $region12: #{_lambda_.9} parent=0 // pred_region
    _
  $region13: #{_lambda_.9} parent=0 // pred_fallthru
    _
  %v15 = vld [vmem:[%s0] sm:$0xff]
  %v16 = vld [vmem:[%s0 + $0x8] sm:$0xff]
  %v17 = vmul.f32 %v15, %v15
  %v18 = vmul.f32 %v16, %v16
  %vm19 = vcmask 261120
  %v20 = vsel %vm19, %v17, 0.0
  %21 = vadd.xlane.f32.xlu0 %v20
  %v22 = vpop.xlane.xlu0 %21
  %v23 = vsel %vm19, %v18, 0.0
  %24 = vadd.xlane.f32.xlu0 %v23
  %v25 = vpop.xlane.xlu0 %24
  %v26 = vrcp.pop 32.0
  %v27 = vmul.f32 32.0, %v26
  %v28 = vsub.f32 1.0, %v27
  %v29 = vmul.f32 %v26, %v28
  %v30 = vadd.f32 %v26, %v29
  %vm31 = vweird.f32 %v26
  %v32 = vsel %vm31, %v26, %v30
  %v33 = vmul.f32 %v22, %v32
  %v34 = vmul.f32 %v25, %v32
  %v35 = vadd.f32 %v33, 1e-06
  %v36 = vadd.f32 %v34, 1e-06
  %v37 = vrsqrt.pop %v35
  %v38 = vmul.f32 %v37, %v35
  %v39 = vmul.f32 %v38, %v37
  %v40 = vmul.f32 0.5, %v39
  %v41 = vsub.f32 1.5, %v40
  %v42 = vmul.f32 %v37, %v41
  %vm43 = vweird.f32 %v35
  %vm44 = vweird.f32 %v37
  %vm45 = vmor %vm43, %vm44
  %v46 = vsel %vm45, %v37, %v42
  %v47 = vrsqrt.pop %v36
  %v48 = vmul.f32 %v47, %v36
  %v49 = vmul.f32 %v48, %v47
  %v50 = vmul.f32 0.5, %v49
  %v51 = vsub.f32 1.5, %v50
  %v52 = vmul.f32 %v47, %v51
  %vm53 = vweird.f32 %v36
  %vm54 = vweird.f32 %v47
  %vm55 = vmor %vm53, %vm54
  %v56 = vsel %vm55, %v47, %v52
  %v57 = vmul.f32 %v15, %v46
  %v58 = vmul.f32 %v16, %v56
  %v59 = vld [vmem:[%s1] sm:$0x1]
  %v61 = vperm.slane %v59, 0
  %v63 = vmul.f32 %v57, %v61
  %v64 = vmul.f32 %v58, %v61
  %v65 = vpack.c.bf16 %v64, %v63
  %v66 = vld [vmem:[%s2] sm:$0xf]
  %v67 = vld [vmem:[%s2 + $0x4] sm:$0xf]
  %v68 = vld [vmem:[%s2 + $0x8] sm:$0xf]
  %v69 = vld [vmem:[%s2 + $0xc] sm:$0xf]
  %v74 = vunpack.c.l.b16 %v66
  %v75 = vunpack.c.l.b16 %v67
  %v76 = vunpack.c.l.b16 %v68
  %v77 = vunpack.c.l.b16 %v69
  %v78 = vpack.c.b16 %v75, %v74
  %v79 = vpack.c.b16 %v77, %v76
  %v83 = vsel %vm19, %v65, 0
  %85 = vmatpush.bf16.msra.mxu0 0
  %86 = vmatpush.bf16.msra.mxu0 0
  %87 = vmatpush.bf16.msra.mxu0 0
  %88 = vmatpush.bf16.msra.mxu0 0
  %89 = vmatpush.bf16.msra.mxu0 0
  %90 = vmatpush.bf16.msra.mxu0 0
  %91 = vmatpush.bf16.msra.mxu0 %v79
  %92 = vmatpush.bf16.msra.mxu0 %v78
  %93 = vmatmul.bf16.gmra.mxu0 %v83
  %v94 = vpop.f32.mrf.mxu0
  %v95 = vadd.f32 0.0, %v94
  %v96 = vpop.f32.mrf.mxu0
  %v97 = vadd.f32 0.0, %v96
  %98 = vdwg.mxu0
  %v99 = vpack.c.bf16 %v95, %v95
  %v100 = vpack.c.bf16 %v97, %v97
  %vm101 = vcmask 781312
  %102 = vst.msk [vmem:[%s3] sm:$0xf] %vm101, %v99
  %103 = vst.msk [vmem:[%s3 + $0x4] sm:$0xf] %vm101, %v100
  // Predicated region
  $region14: #{_lambda_.9} parent=0 // pred_check
    _
  $region15: #{_lambda_.9} parent=0 // pred_check_branch
    %105 = sbr.rel (0) target = $region17
  $region16: #{_lambda_.9} parent=0 // pred_region
    _
  $region17: #{_lambda_.9} parent=0 // pred_fallthru
    _
  // Predicated region
  $region18: #{_lambda_.9} parent=0 // pred_check
    _
  $region19: #{_lambda_.9} parent=0 // pred_check_branch
    %107 = sbr.rel (0) target = $region21
  $region20: #{_lambda_.9} parent=0 // pred_region
    _
  $region21: #{_lambda_.9} parent=0 // pred_fallthru
    _

// kernel: _lambda_.11
$region0: #{_lambda_.11}
  #allocation0 [shape = 'u32[]', space=smem, size = 0x4, offset = 0x4, fixed_abs, tag = 'smem constant byte address 0x4 - core index']
  #allocation1 [shape = 'u32[72,128]{1,0:T(1,128)}', space=vmem, size = 0x9000, scoped, tag = 'internal scratch']
  #allocation2 [shape = 'f32[16,32]{1,0:T(8,128)}', space=vmem, size = 0x2000, scoped, tag = 'scratch operand']
  %s0 = inlined_call_operand.vmem [shape: bf16[16,32], index: 0, kind: input, shape index: {}]
  %s1 = inlined_call_operand.vmem [shape: bf16[32,32], index: 1, kind: input, shape index: {}]
  %s2 = inlined_call_operand.vmem [shape: f32[16,32], index: 2, kind: input, shape index: {}]
  %s3 = inlined_call_operand.vmem [shape: f32[16,32], index: 3, kind: output, shape index: {}]
  %s4 = sld [smem:[#allocation0]]
  $region30: #{_lambda_.11} parent=0
    _
  %s6 = ssub.s32 1, %s4
  %s7 = scalar_select 0, %s6, %s4
  // Predicated region
  $region2: #{_lambda_.11} parent=0 // pred_check
    _
  $region3: #{_lambda_.11} parent=0 // pred_check_branch
    %9 = sbr.rel (0) target = $region5
  $region4: #{_lambda_.11} parent=0 // pred_region
    _
  $region5: #{_lambda_.11} parent=0 // pred_fallthru
    _
  // Predicated region
  $region6: #{_lambda_.11} parent=0 // pred_check
    _
  $region7: #{_lambda_.11} parent=0 // pred_check_branch
    %11 = sbr.rel (0) target = $region9
  $region8: #{_lambda_.11} parent=0 // pred_region
    _
  $region9: #{_lambda_.11} parent=0 // pred_fallthru
    _
  // Predicated region
  $region10: #{_lambda_.11} parent=0 // pred_check
    _
  $region11: #{_lambda_.11} parent=0 // pred_check_branch
    %13 = sbr.rel (0) target = $region13
  $region12: #{_lambda_.11} parent=0 // pred_region
    _
  $region13: #{_lambda_.11} parent=0 // pred_fallthru
    _
  %p15 = scmp.eq.s32.totalorder 0, 0
  // Predicated region
  $region14: #{_lambda_.11} parent=0 // pred_check
    %p16 = pneg %p15
  $region15: #{_lambda_.11} parent=0 // pred_check_branch
    %18 = sbr.rel (%p16) target = $region17
  $region16: #{_lambda_.11} parent=0 // pred_region
    %vm19 = vcmask 261120
    %20 = vst.msk [vmem:[#allocation2] sm:$0xff] %vm19, 0.0
    %21 = vst.msk [vmem:[#allocation2 + $0x8] sm:$0xff] %vm19, 0.0
  $region17: #{_lambda_.11} parent=0 // pred_fallthru
    _
  %v22 = vld [vmem:[#allocation2] sm:$0xff]
  %v23 = vld [vmem:[#allocation2 + $0x8] sm:$0xff]
  %v24 = vld [vmem:[%s0] sm:$0xf]
  %v25 = vld [vmem:[%s0 + $0x4] sm:$0xf]
  %v26 = vld [vmem:[%s1] sm:$0xf]
  %v27 = vld [vmem:[%s1 + $0x4] sm:$0xf]
  %v28 = vld [vmem:[%s1 + $0x8] sm:$0xf]
  %v29 = vld [vmem:[%s1 + $0xc] sm:$0xf]
  %v32 = vunpack.c.l.b16 %v24
  %v33 = vunpack.c.l.b16 %v25
  %v34 = vpack.c.b16 %v33, %v32
  %v39 = vunpack.c.l.b16 %v26
  %v40 = vunpack.c.l.b16 %v27
  %v41 = vunpack.c.l.b16 %v28
  %v42 = vunpack.c.l.b16 %v29
  %v43 = vpack.c.b16 %v40, %v39
  %v44 = vpack.c.b16 %v42, %v41
  %vm47 = vcmask 261120
  %v49 = vsel %vm47, %v34, 0
  %51 = vmatpush.bf16.msra.mxu0 0
  %52 = vmatpush.bf16.msra.mxu0 0
  %53 = vmatpush.bf16.msra.mxu0 0
  %54 = vmatpush.bf16.msra.mxu0 0
  %55 = vmatpush.bf16.msra.mxu0 0
  %56 = vmatpush.bf16.msra.mxu0 0
  %57 = vmatpush.bf16.msra.mxu0 %v44
  %58 = vmatpush.bf16.msra.mxu0 %v43
  %59 = vmatmul.bf16.gmra.mxu0 %v49
  %v60 = vpop.f32.mrf.mxu0
  %v61 = vadd.f32 0.0, %v60
  %v62 = vpop.f32.mrf.mxu0
  %v63 = vadd.f32 0.0, %v62
  %64 = vdwg.mxu0
  %v65 = vadd.f32 %v22, %v61
  %v66 = vadd.f32 %v23, %v63
  %67 = vst.msk [vmem:[#allocation2] sm:$0xff] %vm47, %v65
  %68 = vst.msk [vmem:[#allocation2 + $0x8] sm:$0xff] %vm47, %v66
  // Predicated region
  $region18: #{_lambda_.11} parent=0 // pred_check
    %p69 = pneg %p15
  $region19: #{_lambda_.11} parent=0 // pred_check_branch
    %71 = sbr.rel (%p69) target = $region21
  $region20: #{_lambda_.11} parent=0 // pred_region
    %v72 = vld [vmem:[#allocation2] sm:$0xff]
    %v73 = vld [vmem:[#allocation2 + $0x8] sm:$0xff]
    %v74 = vld [vmem:[%s2] sm:$0xff]
    %v75 = vld [vmem:[%s2 + $0x8] sm:$0xff]
    %v76 = vadd.f32 %v72, %v74
    %v77 = vadd.f32 %v73, %v75
    %78 = vst.msk [vmem:[%s3] sm:$0xff] %vm47, %v76
    %79 = vst.msk [vmem:[%s3 + $0x8] sm:$0xff] %vm47, %v77
  $region21: #{_lambda_.11} parent=0 // pred_fallthru
    _
  // Predicated region
  $region22: #{_lambda_.11} parent=0 // pred_check
    _
  $region23: #{_lambda_.11} parent=0 // pred_check_branch
    %81 = sbr.rel (0) target = $region25
  $region24: #{_lambda_.11} parent=0 // pred_region
    _
  $region25: #{_lambda_.11} parent=0 // pred_fallthru
    _
  // Predicated region
  $region26: #{_lambda_.11} parent=0 // pred_check
    _
  $region27: #{_lambda_.11} parent=0 // pred_check_branch
    %83 = sbr.rel (0) target = $region29
  $region28: #{_lambda_.11} parent=0 // pred_region
    _
  $region29: #{_lambda_.11} parent=0 // pred_fallthru
    _

// kernel: _lambda_.10
$region0: #{_lambda_.10}
  #allocation0 [shape = 'u32[]', space=smem, size = 0x4, offset = 0x4, fixed_abs, tag = 'smem constant byte address 0x4 - core index']
  #allocation1 [shape = 'u32[72,128]{1,0:T(1,128)}', space=vmem, size = 0x9000, scoped, tag = 'internal scratch']
  #allocation2 [shape = 'f32[8,1]{1,0:T(8,128)}', space=vmem, size = 0x1000, scoped, tag = 'scratch operand']
  #allocation3 [shape = 'f32[8,1]{1,0:T(8,128)}', space=vmem, size = 0x1000, scoped, tag = 'scratch operand']
  #allocation4 [shape = 'f32[8,8]{1,0:T(8,128)}', space=vmem, size = 0x1000, scoped, tag = 'scratch operand']
  %s0 = inlined_call_operand.vmem [shape: bf16[2,4,8,8], index: 0, kind: input, shape index: {}]
  %s1 = inlined_call_operand.vmem [shape: bf16[2,4,8,8], index: 1, kind: input, shape index: {}]
  %s2 = inlined_call_operand.vmem [shape: bf16[2,4,8,8], index: 2, kind: input, shape index: {}]
  %s3 = inlined_call_operand.vmem [shape: bf16[1,4,8,8], index: 3, kind: input, shape index: {}]
  %s4 = inlined_call_operand.vmem [shape: bf16[2,1,1,8], index: 4, kind: input, shape index: {}]
  %s5 = inlined_call_operand.vmem [shape: bf16[2,4,8,8], index: 5, kind: output, shape index: {}]
  %s6 = sld [smem:[#allocation0]]
  $region61: #{_lambda_.10} parent=0
    _
  %s8 = ssub.s32 1, %s6
  %s9 = scalar_select 0, %s8, %s6
  loop: start=0, step=1, limit=10
  $region2: #{_lambda_.10} parent=0 // loop_pre_header
    _
  $region3: #{_lambda_.10} parent=0 // loop_header
    %s11 = sphi 0, %s15
    %p12 = scmp.ge.s32.totalorder %s11, 10
    %s18 = sphi 0, %s37
    %s19 = sphi 0, %s33
    %s20 = sphi 0, %s29
    %s21 = sphi 0, %s18
    %s22 = sphi 0, %s19
    %s23 = sphi 0, %s20
    %s24 = sphi 0, %s21
    %s25 = sphi 0, %s22
    %s26 = sphi 0, %s23
    %s42 = sphi 0, %s44
    %s45 = sphi 0, %s42
    %s46 = sphi 0, %s45
    %s62 = sphi 0, %s46
    %s72 = sphi 0, %s74
    %s75 = sphi 0, %s72
    %s76 = sphi 0, %s75
    %s92 = sphi 0, %s76
    %s102 = sphi 0, %s104
    %s105 = sphi 0, %s102
    %s106 = sphi 0, %s105
    %s122 = sphi 0, %s106
    %s130 = sphi 0, %s132
    %s133 = sphi 0, %s130
    %s134 = sphi 0, %s133
    %s150 = sphi 0, %s134
    %s158 = sphi 0, %s160
    %s161 = sphi 0, %s158
    %s162 = sphi 0, %s161
    %s178 = sphi 0, %s162
    %s186 = sphi 0, %s188
    %s189 = sphi 0, %s186
    %s190 = sphi 0, %s189
    %s206 = sphi 0, %s190
  $region4: #{_lambda_.10} parent=0 // loop_header_branch
    %14 = sbr.rel (%p12) target = $region8
  $region5: #{_lambda_.10} parent=0 // loop_body
    %s16 = ssub.s32 %s11, 1
    %s17 = ssub.s32 %s11, 2
    %s27 = sadd.s32 1, %s20
    %p28 = scmp.ge.s32.totalorder %s27, 1
    %s29 = scalar_select %p28, 0, %s27
    %s30 = sadd.s32 1, %s19
    %s31 = scalar_select %p28, %s30, %s19
    %p32 = scmp.ge.s32.totalorder %s31, 4
    %s33 = scalar_select %p32, 0, %s31
    %s34 = sadd.s32 1, %s18
    %s35 = scalar_select %p32, %s34, %s18
    %p36 = scmp.ge.s32.totalorder %s35, 2
    %s37 = scalar_select %p36, 0, %s35
    %s38 = ssub.s32 %s18, %s37
    %s39 = ssub.s32 %s19, %s33
    %s40 = sor.u32 %s38, %s39
    %p41 = scmp.eq.s32.totalorder %s40, 0
    %s43 = sadd.s32 %s42, 1
    %s44 = scalar_select %p41, %s42, %s43
    %p47 = pneg %p41
    %p48 = scmp.eq.s32.totalorder %s11, 7
    %p49 = por %p47, %p48
    %p50 = scmp.ne.s32.totalorder %s42, %s45
    %p51 = scmp.eq.s32.totalorder %s11, 0
    %p52 = por %p50, %p51
    %p53 = scmp.ne.s32.totalorder %s42, %s45
    %p54 = scmp.eq.s32.totalorder %s16, 7
    %p55 = por %p53, %p54
    %p56 = scmp.ne.s32.totalorder %s45, %s46
    %p57 = scmp.eq.s32.totalorder %s16, 0
    %p58 = por %p56, %p57
    %p59 = scmp.ne.s32.totalorder %s45, %s46
    %p60 = scmp.eq.s32.totalorder %s17, 7
    %p61 = por %p59, %p60
    %p63 = scmp.ne.s32.totalorder %s46, %s62
    %p64 = scmp.eq.s32.totalorder %s17, 0
    %p65 = por %p63, %p64
    %s66 = ssub.s32 %s18, %s37
    %s67 = ssub.s32 %s19, %s33
    %s68 = sor.u32 %s66, %s67
    %s69 = ssub.s32 %s20, %s29
    %s70 = sor.u32 %s68, %s69
    %p71 = scmp.eq.s32.totalorder %s70, 0
    %s73 = sadd.s32 %s72, 1
    %s74 = scalar_select %p71, %s72, %s73
    %p77 = pneg %p71
    %p78 = scmp.eq.s32.totalorder %s11, 7
    %p79 = por %p77, %p78
    %p80 = scmp.ne.s32.totalorder %s72, %s75
    %p81 = scmp.eq.s32.totalorder %s11, 0
    %p82 = por %p80, %p81
    %p83 = scmp.ne.s32.totalorder %s72, %s75
    %p84 = scmp.eq.s32.totalorder %s16, 7
    %p85 = por %p83, %p84
    %p86 = scmp.ne.s32.totalorder %s75, %s76
    %p87 = scmp.eq.s32.totalorder %s16, 0
    %p88 = por %p86, %p87
    %p89 = scmp.ne.s32.totalorder %s75, %s76
    %p90 = scmp.eq.s32.totalorder %s17, 7
    %p91 = por %p89, %p90
    %p93 = scmp.ne.s32.totalorder %s76, %s92
    %p94 = scmp.eq.s32.totalorder %s17, 0
    %p95 = por %p93, %p94
    %s96 = ssub.s32 %s18, %s37
    %s97 = ssub.s32 %s19, %s33
    %s98 = sor.u32 %s96, %s97
    %s99 = ssub.s32 %s20, %s29
    %s100 = sor.u32 %s98, %s99
    %p101 = scmp.eq.s32.totalorder %s100, 0
    %s103 = sadd.s32 %s102, 1
    %s104 = scalar_select %p101, %s102, %s103
    %p107 = pneg %p101
    %p108 = scmp.eq.s32.totalorder %s11, 7
    %p109 = por %p107, %p108
    %p110 = scmp.ne.s32.totalorder %s102, %s105
    %p111 = scmp.eq.s32.totalorder %s11, 0
    %p112 = por %p110, %p111
    %p113 = scmp.ne.s32.totalorder %s102, %s105
    %p114 = scmp.eq.s32.totalorder %s16, 7
    %p115 = por %p113, %p114
    %p116 = scmp.ne.s32.totalorder %s105, %s106
    %p117 = scmp.eq.s32.totalorder %s16, 0
    %p118 = por %p116, %p117
    %p119 = scmp.ne.s32.totalorder %s105, %s106
    %p120 = scmp.eq.s32.totalorder %s17, 7
    %p121 = por %p119, %p120
    %p123 = scmp.ne.s32.totalorder %s106, %s122
    %p124 = scmp.eq.s32.totalorder %s17, 0
    %p125 = por %p123, %p124
    %s126 = ssub.s32 %s19, %s33
    %s127 = ssub.s32 %s20, %s29
    %s128 = sor.u32 %s126, %s127
    %p129 = scmp.eq.s32.totalorder %s128, 0
    %s131 = sadd.s32 %s130, 1
    %s132 = scalar_select %p129, %s130, %s131
    %p135 = pneg %p129
    %p136 = scmp.eq.s32.totalorder %s11, 7
    %p137 = por %p135, %p136
    %p138 = scmp.ne.s32.totalorder %s130, %s133
    %p139 = scmp.eq.s32.totalorder %s11, 0
    %p140 = por %p138, %p139
    %p141 = scmp.ne.s32.totalorder %s130, %s133
    %p142 = scmp.eq.s32.totalorder %s16, 7
    %p143 = por %p141, %p142
    %p144 = scmp.ne.s32.totalorder %s133, %s134
    %p145 = scmp.eq.s32.totalorder %s16, 0
    %p146 = por %p144, %p145
    %p147 = scmp.ne.s32.totalorder %s133, %s134
    %p148 = scmp.eq.s32.totalorder %s17, 7
    %p149 = por %p147, %p148
    %p151 = scmp.ne.s32.totalorder %s134, %s150
    %p152 = scmp.eq.s32.totalorder %s17, 0
    %p153 = por %p151, %p152
    %s154 = ssub.s32 %s18, %s37
    %s155 = ssub.s32 %s20, %s29
    %s156 = sor.u32 %s154, %s155
    %p157 = scmp.eq.s32.totalorder %s156, 0
    %s159 = sadd.s32 %s158, 1
    %s160 = scalar_select %p157, %s158, %s159
    %p163 = pneg %p157
    %p164 = scmp.eq.s32.totalorder %s11, 7
    %p165 = por %p163, %p164
    %p166 = scmp.ne.s32.totalorder %s158, %s161
    %p167 = scmp.eq.s32.totalorder %s11, 0
    %p168 = por %p166, %p167
    %p169 = scmp.ne.s32.totalorder %s158, %s161
    %p170 = scmp.eq.s32.totalorder %s16, 7
    %p171 = por %p169, %p170
    %p172 = scmp.ne.s32.totalorder %s161, %s162
    %p173 = scmp.eq.s32.totalorder %s16, 0
    %p174 = por %p172, %p173
    %p175 = scmp.ne.s32.totalorder %s161, %s162
    %p176 = scmp.eq.s32.totalorder %s17, 7
    %p177 = por %p175, %p176
    %p179 = scmp.ne.s32.totalorder %s162, %s178
    %p180 = scmp.eq.s32.totalorder %s17, 0
    %p181 = por %p179, %p180
    %s182 = ssub.s32 %s18, %s37
    %s183 = ssub.s32 %s19, %s33
    %s184 = sor.u32 %s182, %s183
    %p185 = scmp.eq.s32.totalorder %s184, 0
    %s187 = sadd.s32 %s186, 1
    %s188 = scalar_select %p185, %s186, %s187
    %p191 = pneg %p185
    %p192 = scmp.eq.s32.totalorder %s11, 7
    %p193 = por %p191, %p192
    %p194 = scmp.ne.s32.totalorder %s186, %s189
    %p195 = scmp.eq.s32.totalorder %s11, 0
    %p196 = por %p194, %p195
    %p197 = scmp.ne.s32.totalorder %s186, %s189
    %p198 = scmp.eq.s32.totalorder %s16, 7
    %p199 = por %p197, %p198
    %p200 = scmp.ne.s32.totalorder %s189, %s190
    %p201 = scmp.eq.s32.totalorder %s16, 0
    %p202 = por %p200, %p201
    %p203 = scmp.ne.s32.totalorder %s189, %s190
    %p204 = scmp.eq.s32.totalorder %s17, 7
    %p205 = por %p203, %p204
    %p207 = scmp.ne.s32.totalorder %s190, %s206
    %p208 = scmp.eq.s32.totalorder %s17, 0
    %p209 = por %p207, %p208
    %p210 = scmp.le.s32.totalorder 1, %s11
    %p211 = scmp.lt.s32.totalorder %s11, 9
    %p212 = pnand %p210, %p211
    %p213 = pneg %p212
    // Predicated region
    $region9: #{_lambda_.10} parent=5 // pred_check
      _
    $region10: #{_lambda_.10} parent=5 // pred_check_branch
      %215 = sbr.rel (%p212) target = $region12
    $region11: #{_lambda_.10} parent=5 // pred_region
      %s216 = ssub.s32 %s11, 1
    $region12: #{_lambda_.10} parent=5 // pred_fallthru
      _
    %p217 = scmp.lt.s32.totalorder %s11, 8
    // Predicated region
    $region13: #{_lambda_.10} parent=5 // pred_check
      %p218 = pneg %p217
    $region14: #{_lambda_.10} parent=5 // pred_check_branch
      %220 = sbr.rel (%p218) target = $region16
    $region15: #{_lambda_.10} parent=5 // pred_region
      // Predicated region
      $region17: #{_lambda_.10} parent=15 // pred_check
        %p221 = pneg %p52
      $region18: #{_lambda_.10} parent=15 // pred_check_branch
        %223 = sbr.rel (%p221) target = $region20
      $region19: #{_lambda_.10} parent=15 // pred_region
        %p224 = scmp.lt.s32.totalorder %s18, 1
        %s225 = scalar_select %p224, %s18, 1
        %p226 = scmp.lt.s32.totalorder %s19, 3
        %s227 = scalar_select %p226, %s19, 3
        %s228 = smul.addr %s225, 4
        %s229 = sadd.s32 %s227, %s228
        %s230 = smul.addr %s229, 4
        %s231 = scalar_lea.vmem %s0, %s230
      $region20: #{_lambda_.10} parent=15 // pred_fallthru
        _
      // Predicated region
      $region21: #{_lambda_.10} parent=15 // pred_check
        %p232 = pneg %p82
      $region22: #{_lambda_.10} parent=15 // pred_check_branch
        %234 = sbr.rel (%p232) target = $region24
      $region23: #{_lambda_.10} parent=15 // pred_region
        %p235 = scmp.lt.s32.totalorder %s18, 1
        %s236 = scalar_select %p235, %s18, 1
        %p237 = scmp.lt.s32.totalorder %s19, 3
        %s238 = scalar_select %p237, %s19, 3
        %p239 = scmp.lt.s32.totalorder %s20, 0
        %s240 = scalar_select %p239, %s20, 0
        %s241 = sadd.s32 %s240, %s238
        %s242 = smul.addr %s236, 4
        %s243 = sadd.s32 %s241, %s242
        %s244 = smul.addr %s243, 4
        %s245 = scalar_lea.vmem %s1, %s244
      $region24: #{_lambda_.10} parent=15 // pred_fallthru
        _
      // Predicated region
      $region25: #{_lambda_.10} parent=15 // pred_check
        %p246 = pneg %p112
      $region26: #{_lambda_.10} parent=15 // pred_check_branch
        %248 = sbr.rel (%p246) target = $region28
      $region27: #{_lambda_.10} parent=15 // pred_region
        %p249 = scmp.lt.s32.totalorder %s18, 1
        %s250 = scalar_select %p249, %s18, 1
        %p251 = scmp.lt.s32.totalorder %s19, 3
        %s252 = scalar_select %p251, %s19, 3
        %p253 = scmp.lt.s32.totalorder %s20, 0
        %s254 = scalar_select %p253, %s20, 0
        %s255 = sadd.s32 %s254, %s252
        %s256 = smul.addr %s250, 4
        %s257 = sadd.s32 %s255, %s256
        %s258 = smul.addr %s257, 4
        %s259 = scalar_lea.vmem %s2, %s258
      $region28: #{_lambda_.10} parent=15 // pred_fallthru
        _
      // Predicated region
      $region29: #{_lambda_.10} parent=15 // pred_check
        %p260 = pneg %p140
      $region30: #{_lambda_.10} parent=15 // pred_check_branch
        %262 = sbr.rel (%p260) target = $region32
      $region31: #{_lambda_.10} parent=15 // pred_region
        %p263 = scmp.lt.s32.totalorder %s19, 3
        %s264 = scalar_select %p263, %s19, 3
        %p265 = scmp.lt.s32.totalorder %s20, 0
        %s266 = scalar_select %p265, %s20, 0
        %s267 = sadd.s32 %s266, %s264
        %s268 = smul.addr %s267, 4
        %s269 = scalar_lea.vmem %s3, %s268
      $region32: #{_lambda_.10} parent=15 // pred_fallthru
        _
      // Predicated region
      $region33: #{_lambda_.10} parent=15 // pred_check
        %p270 = pneg %p168
      $region34: #{_lambda_.10} parent=15 // pred_check_branch
        %272 = sbr.rel (%p270) target = $region36
      $region35: #{_lambda_.10} parent=15 // pred_region
        %p273 = scmp.lt.s32.totalorder %s18, 1
        %s274 = scalar_select %p273, %s18, 1
        %p275 = scmp.lt.s32.totalorder %s20, 0
        %s276 = scalar_select %p275, %s20, 0
        %s277 = sadd.s32 %s276, %s274
        %s278 = scalar_lea.vmem %s4, %s277
      $region36: #{_lambda_.10} parent=15 // pred_fallthru
        _
    $region16: #{_lambda_.10} parent=5 // pred_fallthru
      _
    %p279 = scmp.le.s32.totalorder 1, %s11
    %p280 = scmp.lt.s32.totalorder %s11, 9
    %p281 = pnand %p279, %p280
    %p282 = pneg %p281
    // Predicated region
    $region37: #{_lambda_.10} parent=5 // pred_check
      _
    $region38: #{_lambda_.10} parent=5 // pred_check_branch
      %284 = sbr.rel (%p281) target = $region40
    $region39: #{_lambda_.10} parent=5 // pred_region
      %s285 = ssub.s32 %s11, 1
      %p286 = scmp.lt.s32.totalorder %s21, 1
      %s287 = scalar_select %p286, %s21, 1
      %p288 = scmp.lt.s32.totalorder %s22, 3
      %s289 = scalar_select %p288, %s22, 3
      %s290 = smul.addr %s287, 4
      %s291 = sadd.s32 %s289, %s290
      %s292 = smul.addr %s291, 4
      %s293 = scalar_lea.vmem %s0, %s292
      %p294 = pneg %p58
      %p295 = pneg %p55
      %p296 = scmp.lt.s32.totalorder %s21, 1
      %s297 = scalar_select %p296, %s21, 1
      %p298 = scmp.lt.s32.totalorder %s22, 3
      %s299 = scalar_select %p298, %s22, 3
      %p300 = scmp.lt.s32.totalorder %s23, 0
      %s301 = scalar_select %p300, %s23, 0
      %s302 = sadd.s32 %s301, %s299
      %s303 = smul.addr %s297, 4
      %s304 = sadd.s32 %s302, %s303
      %s305 = smul.addr %s304, 4
      %s306 = scalar_lea.vmem %s1, %s305
      %p307 = pneg %p88
      %p308 = pneg %p85
      %p309 = scmp.lt.s32.totalorder %s21, 1
      %s310 = scalar_select %p309, %s21, 1
      %p311 = scmp.lt.s32.totalorder %s22, 3
      %s312 = scalar_select %p311, %s22, 3
      %p313 = scmp.lt.s32.totalorder %s23, 0
      %s314 = scalar_select %p313, %s23, 0
      %s315 = sadd.s32 %s314, %s312
      %s316 = smul.addr %s310, 4
      %s317 = sadd.s32 %s315, %s316
      %s318 = smul.addr %s317, 4
      %s319 = scalar_lea.vmem %s2, %s318
      %p320 = pneg %p118
      %p321 = pneg %p115
      %p322 = scmp.lt.s32.totalorder %s22, 3
      %s323 = scalar_select %p322, %s22, 3
      %p324 = scmp.lt.s32.totalorder %s23, 0
      %s325 = scalar_select %p324, %s23, 0
      %s326 = sadd.s32 %s325, %s323
      %s327 = smul.addr %s326, 4
      %s328 = scalar_lea.vmem %s3, %s327
      %p329 = pneg %p146
      %p330 = pneg %p143
      %p331 = scmp.lt.s32.totalorder %s21, 1
      %s332 = scalar_select %p331, %s21, 1
      %p333 = scmp.lt.s32.totalorder %s23, 0
      %s334 = scalar_select %p333, %s23, 0
      %s335 = sadd.s32 %s334, %s332
      %s336 = scalar_lea.vmem %s4, %s335
      %p337 = pneg %p174
      %p338 = pneg %p171
      %p339 = pneg %p202
      %p340 = pneg %p199
      %p341 = scmp.lt.s32.totalorder %s21, 1
      %s342 = scalar_select %p341, %s21, 1
      %p343 = scmp.lt.s32.totalorder %s22, 3
      %s344 = scalar_select %p343, %s22, 3
      %s345 = smul.addr %s342, 4
      %s346 = sadd.s32 %s344, %s345
      %s347 = smul.addr %s346, 4
      %s348 = scalar_lea.vmem %s5, %s347
      %p349 = scmp.lt.s32.totalorder %s21, 1
      %s350 = scalar_select %p349, %s21, 1
      %p351 = scmp.lt.s32.totalorder %s22, 3
      %s352 = scalar_select %p351, %s22, 3
      %s353 = smul.addr %s350, 4
      %s354 = sadd.s32 %s352, %s353
      %s355 = smul.addr %s354, 4
      %s356 = scalar_lea.vmem %s0, %s355
      %p357 = scmp.lt.s32.totalorder %s21, 1
      %s358 = scalar_select %p357, %s21, 1
      %p359 = scmp.lt.s32.totalorder %s22, 3
      %s360 = scalar_select %p359, %s22, 3
      %p361 = scmp.lt.s32.totalorder %s23, 0
      %s362 = scalar_select %p361, %s23, 0
      %s363 = sadd.s32 %s362, %s360
      %s364 = smul.addr %s358, 4
      %s365 = sadd.s32 %s363, %s364
      %s366 = smul.addr %s365, 4
      %s367 = scalar_lea.vmem %s1, %s366
      %p368 = scmp.lt.s32.totalorder %s21, 1
      %s369 = scalar_select %p368, %s21, 1
      %p370 = scmp.lt.s32.totalorder %s22, 3
      %s371 = scalar_select %p370, %s22, 3
      %p372 = scmp.lt.s32.totalorder %s23, 0
      %s373 = scalar_select %p372, %s23, 0
      %s374 = sadd.s32 %s373, %s371
      %s375 = smul.addr %s369, 4
      %s376 = sadd.s32 %s374, %s375
      %s377 = smul.addr %s376, 4
      %s378 = scalar_lea.vmem %s2, %s377
      %p379 = scmp.lt.s32.totalorder %s22, 3
      %s380 = scalar_select %p379, %s22, 3
      %p381 = scmp.lt.s32.totalorder %s23, 0
      %s382 = scalar_select %p381, %s23, 0
      %s383 = sadd.s32 %s382, %s380
      %s384 = smul.addr %s383, 4
      %s385 = scalar_lea.vmem %s3, %s384
      %p386 = scmp.lt.s32.totalorder %s21, 1
      %s387 = scalar_select %p386, %s21, 1
      %p388 = scmp.lt.s32.totalorder %s23, 0
      %s389 = scalar_select %p388, %s23, 0
      %s390 = sadd.s32 %s389, %s387
      %s391 = scalar_lea.vmem %s4, %s390
      %p392 = scmp.lt.s32.totalorder %s21, 1
      %s393 = scalar_select %p392, %s21, 1
      %p394 = scmp.lt.s32.totalorder %s22, 3
      %s395 = scalar_select %p394, %s22, 3
      %s396 = smul.addr %s393, 4
      %s397 = sadd.s32 %s395, %s396
      %s398 = smul.addr %s397, 4
      %s399 = scalar_lea.vmem %s5, %s398
      %p401 = scmp.eq.s32.totalorder %s23, 0
      // Predicated region
      $region41: #{_lambda_.10} parent=39 // pred_check
        %p402 = pneg %p401
      $region42: #{_lambda_.10} parent=39 // pred_check_branch
        %404 = sbr.rel (%p402) target = $region44
      $region43: #{_lambda_.10} parent=39 // pred_region
        %vm405 = vcmask 7168
        %406 = vst.msk [vmem:[#allocation2] sm:$0xff] %vm405, -inf
        %407 = vst.msk [vmem:[#allocation3] sm:$0xff] %vm405, 0.0
        %vm408 = vcmask 64512
        %409 = vst.msk [vmem:[#allocation4] sm:$0xff] %vm408, 0.0
      $region44: #{_lambda_.10} parent=39 // pred_fallthru
        _
      %v410 = vld [vmem:[%s356] sm:$0xf]
      %v411 = vld [vmem:[%s367] sm:$0xf]
      %v412 = vld [vmem:[%s385] sm:$0xf]
      %v413 = vunpack.c.l.bf16 %v412
      %vm414 = vcmask 64512
      %v416 = vsel %vm414, %v410, 0
      %v419 = vsel %vm414, %v411, 0
      %421 = vmatpush.bf16.xpose.msra.mxu0 0
      %422 = vmatpush.bf16.xpose.msra.mxu0 0
      %423 = vmatpush.bf16.xpose.msra.mxu0 0
      %424 = vmatpush.bf16.xpose.msra.mxu0 0
      %425 = vmatpush.bf16.xpose.msra.mxu0 0
      %426 = vmatpush.bf16.xpose.msra.mxu0 0
      %427 = vmatpush.bf16.xpose.msra.mxu0 0
      %428 = vmatpush.bf16.xpose.msra.mxu0 %v419
      %429 = vmatmul.bf16.gmra.mxu0 %v416
      %v430 = vpop.f32.mrf.mxu0
      %v431 = vadd.f32 %v413, %v430
      %v432 = vpop.f32.mrf.mxu0
      %433 = vdwg.mxu0
      %v434 = vld [vmem:[%s391] sm:$0x1]
      %v435 = vunpack.c.l.bf16 %v434
      %v436 = vperm.slane %v435, 0
      %v437 = vadd.f32 %v431, %v436
      %v438 = vld [vmem:[#allocation2] sm:$0xff]
      %v439 = vsel %vm414, %v437, -inf
      %440 = vmax.xlane.f32.xlu0 %v439
      %v441 = vpop.xlane.xlu0 %440
      %v442 = vmax.f32 %v438, %v441
      %v443 = vsub.f32 %v438, %v442
      %v444 = vmul.f32 %v443, 1.442695
      %v445 = vpow.pop %v444
      %447 = vset.pattern.permute.xlu0 0
      %448 = vperm.xlu0 %447, %v442
      %v449 = vpop.permute.xlu0 %448
      %v451 = vsub.f32 %v437, %v449
      %v452 = vmul.f32 %v451, 1.442695
      %v453 = vpow.pop %v452
      %v454 = vld [vmem:[#allocation3] sm:$0xff]
      %v455 = vmul.f32 %v445, %v454
      %v456 = vsel %vm414, %v453, 0.0
      %457 = vadd.xlane.f32.xlu0 %v456
      %v458 = vpop.xlane.xlu0 %457
      %v459 = vadd.f32 %v455, %v458
      %vm460 = vcmask 7168
      %461 = vst.msk [vmem:[#allocation3] sm:$0xff] %vm460, %v459
      %v462 = vld [vmem:[#allocation4] sm:$0xff]
      %464 = vset.pattern.permute.xlu0 0
      %465 = vperm.xlu0 %464, %v445
      %v466 = vpop.permute.xlu0 %465
      %v468 = vmul.f32 %v466, %v462
      %v469 = vpack.c.bf16 %v453, %v453
      %v470 = vld [vmem:[%s378] sm:$0xf]
      %v472 = vsel %vm414, %v469, 0
      %vm474 = vcmask 1043456
      %v476 = vsel %vm474, %v470, 0
      %478 = vmatpush.bf16.msra.mxu0 0
      %479 = vmatpush.bf16.msra.mxu0 0
      %480 = vmatpush.bf16.msra.mxu0 0
      %481 = vmatpush.bf16.msra.mxu0 0
      %482 = vmatpush.bf16.msra.mxu0 0
      %483 = vmatpush.bf16.msra.mxu0 0
      %484 = vmatpush.bf16.msra.mxu0 0
      %485 = vmatpush.bf16.msra.mxu0 %v476
      %486 = vmatmul.bf16.gmra.mxu0 %v472
      %v487 = vpop.f32.mrf.mxu0
      %v488 = vadd.f32 0.0, %v487
      %v489 = vpop.f32.mrf.mxu0
      %490 = vdwg.mxu0
      %v491 = vadd.f32 %v468, %v488
      %492 = vst.msk [vmem:[#allocation4] sm:$0xff] %vm414, %v491
      %493 = vst.msk [vmem:[#allocation2] sm:$0xff] %vm460, %v442
      // Predicated region
      $region45: #{_lambda_.10} parent=39 // pred_check
        %p494 = pneg %p401
      $region46: #{_lambda_.10} parent=39 // pred_check_branch
        %496 = sbr.rel (%p494) target = $region48
      $region47: #{_lambda_.10} parent=39 // pred_region
        %v497 = vld [vmem:[#allocation3] sm:$0xff]
        %v498 = vmax.f32 %v497, 1e-30
        %v499 = vld [vmem:[#allocation4] sm:$0xff]
        %501 = vset.pattern.permute.xlu0 0
        %502 = vperm.xlu0 %501, %v498
        %v503 = vpop.permute.xlu0 %502
        %v505 = vrcp.pop %v503
        %v506 = vmul.f32 %v503, %v505
        %v507 = vsub.f32 1.0, %v506
        %v508 = vmul.f32 %v505, %v507
        %v509 = vadd.f32 %v505, %v508
        %vm510 = vweird.f32 %v503
        %vm511 = vweird.f32 %v505
        %vm512 = vmor %vm510, %vm511
        %v513 = vsel %vm512, %v505, %v509
        %v514 = vand.u32 2147483647, %v503
        %vm515 = vcmp.eq.f32.partialorder %v514, 8.507059e+37
        %v516 = vand.u32 %v503, 2147483648
        %v517 = vor.u32 1.1754944e-38, %v516
        %v518 = vsel %vm515, %v517, %v513
        %v519 = vmul.f32 %v499, %v518
        %v520 = vpack.c.bf16 %v519, %v519
        %vm521 = vcmask 60416
        %522 = vst.msk [vmem:[%s399] sm:$0xf] %vm521, %v520
      $region48: #{_lambda_.10} parent=39 // pred_fallthru
        _
      %p523 = scmp.lt.s32.totalorder %s21, 1
      %s524 = scalar_select %p523, %s21, 1
      %p525 = scmp.lt.s32.totalorder %s22, 3
      %s526 = scalar_select %p525, %s22, 3
      %s527 = smul.addr %s524, 4
      %s528 = sadd.s32 %s526, %s527
      %s529 = smul.addr %s528, 4
      %s530 = scalar_lea.vmem %s5, %s529
      // Predicated region
      $region49: #{_lambda_.10} parent=39 // pred_check
        %p531 = pneg %p199
      $region50: #{_lambda_.10} parent=39 // pred_check_branch
        %533 = sbr.rel (%p531) target = $region52
      $region51: #{_lambda_.10} parent=39 // pred_region
        _
      $region52: #{_lambda_.10} parent=39 // pred_fallthru
        _
    $region40: #{_lambda_.10} parent=5 // pred_fallthru
      _
    %p534 = scmp.le.s32.totalorder 2, %s11
    // Predicated region
    $region53: #{_lambda_.10} parent=5 // pred_check
      %p535 = pneg %p534
    $region54: #{_lambda_.10} parent=5 // pred_check_branch
      %537 = sbr.rel (%p535) target = $region56
    $region55: #{_lambda_.10} parent=5 // pred_region
      %s538 = ssub.s32 %s11, 2
      // Predicated region
      $region57: #{_lambda_.10} parent=55 // pred_check
        %p539 = pneg %p205
      $region58: #{_lambda_.10} parent=55 // pred_check_branch
        %541 = sbr.rel (%p539) target = $region60
      $region59: #{_lambda_.10} parent=55 // pred_region
        %p542 = scmp.lt.s32.totalorder %s24, 1
        %s543 = scalar_select %p542, %s24, 1
        %p544 = scmp.lt.s32.totalorder %s25, 3
        %s545 = scalar_select %p544, %s25, 3
        %s546 = smul.addr %s543, 4
        %s547 = sadd.s32 %s545, %s546
        %s548 = smul.addr %s547, 4
        %s549 = scalar_lea.vmem %s5, %s548
      $region60: #{_lambda_.10} parent=55 // pred_fallthru
        _
    $region56: #{_lambda_.10} parent=5 // pred_fallthru
      _
  $region6: #{_lambda_.10} parent=0 // loop_footer
    %s15 = sadd.s32 1, %s11
  $region7: #{_lambda_.10} parent=0 // loop_footer_branch
    %10 = sbr.rel target = $region3
  $region8: #{_lambda_.10} parent=0 // loop_exit
    _

// kernel: _lambda_.17
$region0: #{_lambda_.17}
  #allocation0 [shape = 'u32[]', space=smem, size = 0x4, offset = 0x4, fixed_abs, tag = 'smem constant byte address 0x4 - core index']
  #allocation1 [shape = 'u32[72,128]{1,0:T(1,128)}', space=vmem, size = 0x9000, scoped, tag = 'internal scratch']
  %s0 = inlined_call_operand.vmem [shape: f32[16,32], index: 0, kind: input, shape index: {}]
  %s1 = inlined_call_operand.vmem [shape: f32[1,32], index: 1, kind: input, shape index: {}]
  %s2 = inlined_call_operand.hbm [shape: f32[16,32], index: 2, kind: output, shape index: {}]
  %s3 = sld [smem:[#allocation0]]
  $region18: #{_lambda_.17} parent=0
    _
  %s5 = ssub.s32 1, %s3
  %s6 = scalar_select 0, %s5, %s3
  $region1: #{_lambda_.17} parent=0
    #allocation2 [shape = 'u8[8192]{0}', space=vmem, size = 0x2000, scoped, tag = 'output window, operand 0, single buffered']
    #allocation3 [shape = 's32[1]{0}', space=sflag, size = 0x4, scoped, tag = 'scoped memory for _lambda_.17']
    %7 = vsyncpa [#allocation3], 0
    // Predicated region
    $region2: #{_lambda_.17} parent=1 // pred_check
      _
    $region3: #{_lambda_.17} parent=1 // pred_check_branch
      %9 = sbr.rel (0) target = $region5
    $region4: #{_lambda_.17} parent=1 // pred_region
      _
    $region5: #{_lambda_.17} parent=1 // pred_fallthru
      _
    // Predicated region
    $region6: #{_lambda_.17} parent=1 // pred_check
      _
    $region7: #{_lambda_.17} parent=1 // pred_check_branch
      %11 = sbr.rel (0) target = $region9
    $region8: #{_lambda_.17} parent=1 // pred_region
      _
    $region9: #{_lambda_.17} parent=1 // pred_fallthru
      _
    %v12 = vld [vmem:[%s0] sm:$0xff]
    %v13 = vld [vmem:[%s0 + $0x8] sm:$0xff]
    %v14 = vmul.f32 %v12, %v12
    %v15 = vmul.f32 %v13, %v13
    %vm16 = vcmask 261120
    %v17 = vsel %vm16, %v14, 0.0
    %18 = vadd.xlane.f32.xlu0 %v17
    %v19 = vpop.xlane.xlu0 %18
    %v20 = vsel %vm16, %v15, 0.0
    %21 = vadd.xlane.f32.xlu0 %v20
    %v22 = vpop.xlane.xlu0 %21
    %v23 = vrcp.pop 32.0
    %v24 = vmul.f32 32.0, %v23
    %v25 = vsub.f32 1.0, %v24
    %v26 = vmul.f32 %v23, %v25
    %v27 = vadd.f32 %v23, %v26
    %vm28 = vweird.f32 %v23
    %v29 = vsel %vm28, %v23, %v27
    %v30 = vmul.f32 %v19, %v29
    %v31 = vmul.f32 %v22, %v29
    %v32 = vadd.f32 %v30, 1e-06
    %v33 = vadd.f32 %v31, 1e-06
    %v34 = vrsqrt.pop %v32
    %v35 = vmul.f32 %v34, %v32
    %v36 = vmul.f32 %v35, %v34
    %v37 = vmul.f32 0.5, %v36
    %v38 = vsub.f32 1.5, %v37
    %v39 = vmul.f32 %v34, %v38
    %vm40 = vweird.f32 %v32
    %vm41 = vweird.f32 %v34
    %vm42 = vmor %vm40, %vm41
    %v43 = vsel %vm42, %v34, %v39
    %v44 = vrsqrt.pop %v33
    %v45 = vmul.f32 %v44, %v33
    %v46 = vmul.f32 %v45, %v44
    %v47 = vmul.f32 0.5, %v46
    %v48 = vsub.f32 1.5, %v47
    %v49 = vmul.f32 %v44, %v48
    %vm50 = vweird.f32 %v33
    %vm51 = vweird.f32 %v44
    %vm52 = vmor %vm50, %vm51
    %v53 = vsel %vm52, %v44, %v49
    %v54 = vmul.f32 %v12, %v43
    %v55 = vmul.f32 %v13, %v53
    %v56 = vld [vmem:[%s1] sm:$0x1]
    %v58 = vperm.slane %v56, 0
    %v60 = vmul.f32 %v54, %v58
    %v61 = vmul.f32 %v55, %v58
    %62 = vst.msk [vmem:[#allocation2] sm:$0xff] %vm16, %v60
    %63 = vst.msk [vmem:[#allocation2 + $0x8] sm:$0xff] %vm16, %v61
    // Predicated region
    $region10: #{_lambda_.17} parent=1 // pred_check
      _
    $region11: #{_lambda_.17} parent=1 // pred_check_branch
      %65 = sbr.rel (0) target = $region13
    $region12: #{_lambda_.17} parent=1 // pred_region
      %67 = vsyncadd [#allocation3], 0
      %s68 = sshll.u32 [#allocation2], 4
      %s69 = int_to_ptr.vmem [resolvable:$true] %s68
      %s70 = sshll.u32 %s2, 4
      %s71 = int_to_ptr.hbm [resolvable:$true] %s70
      %76 = dma.vmem_to_hbm [thread:$0]  %s69, 256, %s71, [#allocation3], 128, 128, 8
    $region13: #{_lambda_.17} parent=1 // pred_fallthru
      _
    // Predicated region
    $region14: #{_lambda_.17} parent=1 // pred_check
      _
    $region15: #{_lambda_.17} parent=1 // pred_check_branch
      %78 = sbr.rel (0) target = $region17
    $region16: #{_lambda_.17} parent=1 // pred_region
      %80 = dma.done [#allocation3], 256
    $region17: #{_lambda_.17} parent=1 // pred_fallthru
      _
    %81 = vsyncpa [#allocation3], 1

// kernel: _lambda_.12
$region0: #{_lambda_.12}
  #allocation0 [shape = 'u32[]', space=smem, size = 0x4, offset = 0x4, fixed_abs, tag = 'smem constant byte address 0x4 - core index']
  #allocation1 [shape = 'u32[72,128]{1,0:T(1,128)}', space=vmem, size = 0x9000, scoped, tag = 'internal scratch']
  #allocation2 [shape = 'f32[16,32]{1,0:T(8,128)}', space=vmem, size = 0x2000, scoped, tag = 'scratch operand']
  %s0 = inlined_call_operand.vmem [shape: f32[16,32], index: 0, kind: input, shape index: {}]
  %s1 = inlined_call_operand.vmem [shape: f32[1,32], index: 1, kind: input, shape index: {}]
  %s2 = inlined_call_operand.vmem [shape: bf16[32,64], index: 2, kind: input, shape index: {}]
  %s3 = inlined_call_operand.vmem [shape: bf16[64,32], index: 3, kind: input, shape index: {}]
  %s4 = inlined_call_operand.vmem [shape: f32[16,32], index: 4, kind: output, shape index: {}]
  %s5 = sld [smem:[#allocation0]]
  $region34: #{_lambda_.12} parent=0
    _
  %s7 = ssub.s32 1, %s5
  %s8 = scalar_select 0, %s7, %s5
  // Predicated region
  $region2: #{_lambda_.12} parent=0 // pred_check
    _
  $region3: #{_lambda_.12} parent=0 // pred_check_branch
    %10 = sbr.rel (0) target = $region5
  $region4: #{_lambda_.12} parent=0 // pred_region
    _
  $region5: #{_lambda_.12} parent=0 // pred_fallthru
    _
  // Predicated region
  $region6: #{_lambda_.12} parent=0 // pred_check
    _
  $region7: #{_lambda_.12} parent=0 // pred_check_branch
    %12 = sbr.rel (0) target = $region9
  $region8: #{_lambda_.12} parent=0 // pred_region
    _
  $region9: #{_lambda_.12} parent=0 // pred_fallthru
    _
  // Predicated region
  $region10: #{_lambda_.12} parent=0 // pred_check
    _
  $region11: #{_lambda_.12} parent=0 // pred_check_branch
    %14 = sbr.rel (0) target = $region13
  $region12: #{_lambda_.12} parent=0 // pred_region
    _
  $region13: #{_lambda_.12} parent=0 // pred_fallthru
    _
  // Predicated region
  $region14: #{_lambda_.12} parent=0 // pred_check
    _
  $region15: #{_lambda_.12} parent=0 // pred_check_branch
    %16 = sbr.rel (0) target = $region17
  $region16: #{_lambda_.12} parent=0 // pred_region
    _
  $region17: #{_lambda_.12} parent=0 // pred_fallthru
    _
  %p18 = scmp.eq.s32.totalorder 0, 0
  // Predicated region
  $region18: #{_lambda_.12} parent=0 // pred_check
    %p19 = pneg %p18
  $region19: #{_lambda_.12} parent=0 // pred_check_branch
    %21 = sbr.rel (%p19) target = $region21
  $region20: #{_lambda_.12} parent=0 // pred_region
    %vm22 = vcmask 261120
    %23 = vst.msk [vmem:[#allocation2] sm:$0xff] %vm22, 0.0
    %24 = vst.msk [vmem:[#allocation2 + $0x8] sm:$0xff] %vm22, 0.0
  $region21: #{_lambda_.12} parent=0 // pred_fallthru
    _
  %v25 = vld [vmem:[%s0] sm:$0xff]
  %v26 = vld [vmem:[%s0 + $0x8] sm:$0xff]
  %v27 = vmul.f32 %v25, %v25
  %v28 = vmul.f32 %v26, %v26
  %vm29 = vcmask 261120
  %v30 = vsel %vm29, %v27, 0.0
  %31 = vadd.xlane.f32.xlu0 %v30
  %v32 = vpop.xlane.xlu0 %31
  %v33 = vsel %vm29, %v28, 0.0
  %34 = vadd.xlane.f32.xlu0 %v33
  %v35 = vpop.xlane.xlu0 %34
  %v36 = vrcp.pop 32.0
  %v37 = vmul.f32 32.0, %v36
  %v38 = vsub.f32 1.0, %v37
  %v39 = vmul.f32 %v36, %v38
  %v40 = vadd.f32 %v36, %v39
  %vm41 = vweird.f32 %v36
  %v42 = vsel %vm41, %v36, %v40
  %v43 = vmul.f32 %v32, %v42
  %v44 = vmul.f32 %v35, %v42
  %v45 = vadd.f32 %v43, 1e-06
  %v46 = vadd.f32 %v44, 1e-06
  %v47 = vrsqrt.pop %v45
  %v48 = vmul.f32 %v47, %v45
  %v49 = vmul.f32 %v48, %v47
  %v50 = vmul.f32 0.5, %v49
  %v51 = vsub.f32 1.5, %v50
  %v52 = vmul.f32 %v47, %v51
  %vm53 = vweird.f32 %v45
  %vm54 = vweird.f32 %v47
  %vm55 = vmor %vm53, %vm54
  %v56 = vsel %vm55, %v47, %v52
  %v57 = vrsqrt.pop %v46
  %v58 = vmul.f32 %v57, %v46
  %v59 = vmul.f32 %v58, %v57
  %v60 = vmul.f32 0.5, %v59
  %v61 = vsub.f32 1.5, %v60
  %v62 = vmul.f32 %v57, %v61
  %vm63 = vweird.f32 %v46
  %vm64 = vweird.f32 %v57
  %vm65 = vmor %vm63, %vm64
  %v66 = vsel %vm65, %v57, %v62
  %v67 = vmul.f32 %v25, %v56
  %v68 = vmul.f32 %v26, %v66
  %v69 = vld [vmem:[%s1] sm:$0x1]
  %v71 = vperm.slane %v69, 0
  %v73 = vmul.f32 %v67, %v71
  %v74 = vmul.f32 %v68, %v71
  %v75 = vpack.c.bf16 %v74, %v73
  %v76 = vld [vmem:[%s2] sm:$0xf]
  %v77 = vld [vmem:[%s2 + $0x4] sm:$0xf]
  %v78 = vld [vmem:[%s2 + $0x8] sm:$0xf]
  %v79 = vld [vmem:[%s2 + $0xc] sm:$0xf]
  %v84 = vunpack.c.l.b16 %v76
  %v85 = vunpack.c.l.b16 %v77
  %v86 = vunpack.c.l.b16 %v78
  %v87 = vunpack.c.l.b16 %v79
  %v88 = vpack.c.b16 %v85, %v84
  %v89 = vpack.c.b16 %v87, %v86
  %v93 = vsel %vm29, %v75, 0
  %95 = vmatpush.bf16.msra.mxu0 0
  %96 = vmatpush.bf16.msra.mxu0 0
  %97 = vmatpush.bf16.msra.mxu0 0
  %98 = vmatpush.bf16.msra.mxu0 0
  %99 = vmatpush.bf16.msra.mxu0 0
  %100 = vmatpush.bf16.msra.mxu0 0
  %101 = vmatpush.bf16.msra.mxu0 %v89
  %102 = vmatpush.bf16.msra.mxu0 %v88
  %103 = vmatmul.bf16.gmra.mxu0 %v93
  %v104 = vpop.f32.mrf.mxu0
  %v105 = vadd.f32 0.0, %v104
  %v106 = vpop.f32.mrf.mxu0
  %v107 = vadd.f32 0.0, %v106
  %108 = vdwg.mxu0
  %v109 = vmax.f32 %v105, 0.0
  %v110 = vmax.f32 %v107, 0.0
  %v111 = vpack.c.bf16 %v110, %v109
  %v112 = vld [vmem:[#allocation2] sm:$0xff]
  %v113 = vld [vmem:[#allocation2 + $0x8] sm:$0xff]
  %v114 = vld [vmem:[%s3] sm:$0xf]
  %v115 = vld [vmem:[%s3 + $0x4] sm:$0xf]
  %v116 = vld [vmem:[%s3 + $0x8] sm:$0xf]
  %v117 = vld [vmem:[%s3 + $0xc] sm:$0xf]
  %v118 = vld [vmem:[%s3 + $0x10] sm:$0xf]
  %v119 = vld [vmem:[%s3 + $0x14] sm:$0xf]
  %v120 = vld [vmem:[%s3 + $0x18] sm:$0xf]
  %v121 = vld [vmem:[%s3 + $0x1c] sm:$0xf]
  %v130 = vunpack.c.l.b16 %v114
  %v131 = vunpack.c.l.b16 %v115
  %v132 = vunpack.c.l.b16 %v116
  %v133 = vunpack.c.l.b16 %v117
  %v134 = vunpack.c.l.b16 %v118
  %v135 = vunpack.c.l.b16 %v119
  %v136 = vunpack.c.l.b16 %v120
  %v137 = vunpack.c.l.b16 %v121
  %v138 = vpack.c.b16 %v131, %v130
  %v139 = vpack.c.b16 %v133, %v132
  %v140 = vpack.c.b16 %v135, %v134
  %v141 = vpack.c.b16 %v137, %v136
  %vm146 = vcmask 523264
  %v148 = vsel %vm146, %v111, 0
  %150 = vmatpush.bf16.msra.mxu0 0
  %151 = vmatpush.bf16.msra.mxu0 0
  %152 = vmatpush.bf16.msra.mxu0 0
  %153 = vmatpush.bf16.msra.mxu0 0
  %154 = vmatpush.bf16.msra.mxu0 %v141
  %155 = vmatpush.bf16.msra.mxu0 %v140
  %156 = vmatpush.bf16.msra.mxu0 %v139
  %157 = vmatpush.bf16.msra.mxu0 %v138
  %158 = vmatmul.bf16.gmra.mxu0 %v148
  %v159 = vpop.f32.mrf.mxu0
  %v160 = vadd.f32 0.0, %v159
  %v161 = vpop.f32.mrf.mxu0
  %v162 = vadd.f32 0.0, %v161
  %163 = vdwg.mxu0
  %v164 = vadd.f32 %v112, %v160
  %v165 = vadd.f32 %v113, %v162
  %166 = vst.msk [vmem:[#allocation2] sm:$0xff] %vm29, %v164
  %167 = vst.msk [vmem:[#allocation2 + $0x8] sm:$0xff] %vm29, %v165
  // Predicated region
  $region22: #{_lambda_.12} parent=0 // pred_check
    %p168 = pneg %p18
  $region23: #{_lambda_.12} parent=0 // pred_check_branch
    %170 = sbr.rel (%p168) target = $region25
  $region24: #{_lambda_.12} parent=0 // pred_region
    %v171 = vld [vmem:[#allocation2] sm:$0xff]
    %v172 = vld [vmem:[#allocation2 + $0x8] sm:$0xff]
    %v173 = vadd.f32 %v171, %v25
    %v174 = vadd.f32 %v172, %v26
    %175 = vst.msk [vmem:[%s4] sm:$0xff] %vm29, %v173
    %176 = vst.msk [vmem:[%s4 + $0x8] sm:$0xff] %vm29, %v174
  $region25: #{_lambda_.12} parent=0 // pred_fallthru
    _
  // Predicated region
  $region26: #{_lambda_.12} parent=0 // pred_check
    _
  $region27: #{_lambda_.12} parent=0 // pred_check_branch
    %178 = sbr.rel (0) target = $region29
  $region28: #{_lambda_.12} parent=0 // pred_region
    _
  $region29: #{_lambda_.12} parent=0 // pred_fallthru
    _
  // Predicated region
  $region30: #{_lambda_.12} parent=0 // pred_check
    _
  $region31: #{_lambda_.12} parent=0 // pred_check_branch
    %180 = sbr.rel (0) target = $region33
  $region32: #{_lambda_.12} parent=0 // pred_region
    _
  $region33: #{_lambda_.12} parent=0 // pred_fallthru
    _

</llo_original>
